<compile_context>
chip_gen: v7x
topology: tpu7x:2x2x1
jax: 0.10.0
libtpu: 0.0.40
codegen_flags: <defaults>
</compile_context>

<pallas_src>
import math
import functools

import jax
import jax.numpy as jnp
from jax import lax
from jax.experimental import pallas as pl
from jax.experimental.pallas import tpu as pltpu


def _round_up(x, m):
    return (x + m - 1) // m * m


def _pick_tile(n, target):
    """Largest tile t <= target with n % t == 0 and t % 8 == 0, else n (full dim)."""
    if n <= target:
        return n
    for t in range(target, 7, -1):
        if n % t == 0 and t % 8 == 0:
            return t
    return n


# ----------------------------------------------------------------------------
# Fused Pallas kernel: one (batch, query-tile) per grid step
# ----------------------------------------------------------------------------
def _fused_attention_kernel(xfull_ref, xq_ref, wq_ref, bq_ref, wkv_ref, bkv_ref,
                            wproj_ref, bproj_ref, o_ref, kv_scr,
                            *, num_heads, hp, kv_tile):
    """
    xfull_ref: (1, N, C)    full sequence (K/V projection; resident across q tiles)
    xq_ref:    (1, tq, C)   query tile of the sequence
    wq_ref:    (C, Cp)      q weight, head-major, each head padded hd->hp, pre-scaled
    bq_ref:    (1, Cp)      q bias (pre-scaled, padded)
    wkv_ref:   (C, 2*Cp)    [K | V] weights, head-major padded
    bkv_ref:   (1, 2*Cp)    [K | V] bias
    wproj_ref: (Cp, C)      proj weight, head-major padded rows (pad rows are zero)
    bproj_ref: (1, C)       proj bias
    o_ref:     (1, tq, C)   output tile
    kv_scr:    (N, 2*Cp)    VMEM cache of K|V for the current batch element
    """
    N = xfull_ref.shape[1]
    tq = o_ref.shape[1]
    c_out = o_ref.shape[2]
    Cp = num_heads * hp
    qi = pl.program_id(1)

    # K/V projection for the whole sequence, computed once per batch element
    # (the q-tile grid axis is "arbitrary", so qi runs 0..nq-1 in order on the
    # core that owns this batch element) and cached in VMEM scratch.
    @pl.when(qi == 0)
    def _():
        kv_scr[...] = (jnp.dot(xfull_ref[0], wkv_ref[...],
                               preferred_element_type=jnp.float32)
                       + bkv_ref[...])

    # Q projection for this query tile only.  The softmax scale was folded into
    # the q weight/bias in the wrapper, so q arrives pre-scaled.
    q = (jnp.dot(xq_ref[0], wq_ref[...], preferred_element_type=jnp.float32)
         + bq_ref[...])                                           # (tq, Cp)

    n_kv = N // kv_tile
    out = jnp.zeros((tq, c_out), jnp.float32) + bproj_ref[...]    # (tq, C)

    # TODO(synk): for H >= 12 fold this unrolled head loop into one batched
    # lax.dot_general over a leading head axis (cuts code size / vreg pressure).
    for h in range(num_heads):
        lo = h * hp                                               # 128-aligned
        qh = q[:, lo:lo + hp]                                     # (tq, hp)

        m = jnp.full((tq, 1), -jnp.inf, dtype=jnp.float32)
        l = jnp.zeros((tq, 1), dtype=jnp.float32)
        acc = jnp.zeros((tq, hp), dtype=jnp.float32)

        # Online-softmax (flash) over KV tiles: only (tq, kv_tile) score tiles
        # are ever materialized.
        for kt in range(n_kv):
            ks = kt * kv_tile
            kh = kv_scr[ks:ks + kv_tile, lo:lo + hp]              # (tk, hp)
            vh = kv_scr[ks:ks + kv_tile, Cp + lo:Cp + lo + hp]    # (tk, hp)

            # q @ k^T without an explicit transpose of k.
            s = lax.dot_general(qh, kh, (((1,), (1,)), ((), ())),
                                preferred_element_type=jnp.float32)  # (tq, tk)
            m_new = jnp.maximum(m, jnp.max(s, axis=-1, keepdims=True))
            alpha = jnp.exp(m - m_new)
            p = jnp.exp(s - m_new)
            l = alpha * l + jnp.sum(p, axis=-1, keepdims=True)
            acc = alpha * acc + jnp.dot(p, vh,
                                        preferred_element_type=jnp.float32)
            m = m_new

        # Deferred softmax normalization: one reciprocal per query row instead
        # of an elementwise divide over every score tile.
        inv_l = 1.0 / l
        # Per-head projection contribution accumulated directly -> no (N, C)
        # attention scratch round-trip before the proj GEMM.  Padded head
        # columns of acc are exactly zero, and padded proj rows are zero too.
        out = out + jnp.dot(acc * inv_l, wproj_ref[lo:lo + hp, :],
                            preferred_element_type=jnp.float32)

    o_ref[0] = out


# ----------------------------------------------------------------------------
# Parameters (shapes match the PyTorch module)
# ----------------------------------------------------------------------------
def init_attention_params(key, dim, num_heads):
    k1, k2, k3, k4 = jax.random.split(key, 4)
    bound = 1.0 / math.sqrt(dim)
    return {
        "qkv_w": jax.random.uniform(k1, (3 * dim, dim), jnp.float32, -bound, bound),
        "qkv_b": jax.random.uniform(k2, (3 * dim,), jnp.float32, -bound, bound),
        "proj_w": jax.random.uniform(k3, (dim, dim), jnp.float32, -bound, bound),
        "proj_b": jax.random.uniform(k4, (dim,), jnp.float32, -bound, bound),
    }


def _pack_head_major(w_rows, b_rows, H, hd, hp, scale=1.0):
    """Pack (H*hd, C_in) weight rows + (H*hd,) bias into head-major, lane-aligned
    (C_in, H*hp) / (1, H*hp) layouts with each head zero-padded from hd to hp."""
    C_in = w_rows.shape[1]
    wt = (w_rows.astype(jnp.float32) * scale).T.reshape(C_in, H, hd)
    wp = jnp.zeros((C_in, H, hp), jnp.float32).at[:, :, :hd].set(wt)
    bp = jnp.zeros((H, hp), jnp.float32).at[:, :hd].set(
        (b_rows.astype(jnp.float32) * scale).reshape(H, hd))
    return wp.reshape(C_in, H * hp), bp.reshape(1, H * hp)


# ----------------------------------------------------------------------------
# Forward wrapper
# ----------------------------------------------------------------------------
def attention_forward(params, x, num_heads, *, q_tile_target=256, kv_tile_target=512):
    """Attention.forward for the full-precision (N_bits=None) path.
    x: (B, N, C) float32 -> (B, N, C) float32."""
    B, N, C = x.shape
    H = num_heads
    hd = C // H
    hp = _round_up(hd, 128)        # lane-aligned per-head width (zero-padded)
    Cp = H * hp
    scale = hd ** (-0.5)

    x = x.astype(jnp.float32)
    qkv_w = params["qkv_w"].astype(jnp.float32)
    qkv_b = params["qkv_b"].astype(jnp.float32)

    # Fold the softmax scale into the q weight/bias once.
    wq, bq = _pack_head_major(qkv_w[:C], qkv_b[:C], H, hd, hp, scale)
    wk, bk = _pack_head_major(qkv_w[C:2 * C], qkv_b[C:2 * C], H, hd, hp)
    wv, bv = _pack_head_major(qkv_w[2 * C:], qkv_b[2 * C:], H, hd, hp)
    wkv = jnp.concatenate([wk, wv], axis=1)                       # (C, 2*Cp)
    bkv = jnp.concatenate([bk, bv], axis=1)                       # (1, 2*Cp)

    proj_w = params["proj_w"].astype(jnp.float32)
    wproj = (jnp.zeros((H, hp, C), jnp.float32)
             .at[:, :hd, :].set(proj_w.T.reshape(H, hd, C))
             .reshape(Cp, C))                                     # (Cp, C)
    bproj = params["proj_b"].astype(jnp.float32).reshape(1, C)

    tq = _pick_tile(N, q_tile_target)
    tk = _pick_tile(N, kv_tile_target)
    nq = N // tq

    # Advisory cost estimate for the XLA scheduler.
    flops = B * (2 * N * C * Cp            # q GEMM
                 + 2 * N * C * 2 * Cp      # kv GEMM
                 + 4 * H * N * N * hp      # scores + attn @ v
                 + 2 * N * Cp * C)         # proj GEMM
    transcendentals = B * H * N * N        # exp in softmax
    bytes_accessed = 4 * (3 * B * N * C                     # x (read twice), out
                          + C * Cp + Cp + C * 2 * Cp + 2 * Cp
                          + Cp * C + C)

    kern = functools.partial(_fused_attention_kernel,
                             num_heads=H, hp=hp, kv_tile=tk)

    return pl.pallas_call(
        kern,
        out_shape=jax.ShapeDtypeStruct((B, N, C), jnp.float32),
        grid=(B, nq),
        in_specs=[
            pl.BlockSpec((1, N, C), lambda b, q: (b, 0, 0)),    # x full (resident across q tiles)
            pl.BlockSpec((1, tq, C), lambda b, q: (b, q, 0)),   # x query tile
            pl.BlockSpec((C, Cp), lambda b, q: (0, 0)),         # q weight (resident)
            pl.BlockSpec((1, Cp), lambda b, q: (0, 0)),         # q bias
            pl.BlockSpec((C, 2 * Cp), lambda b, q: (0, 0)),     # kv weight (resident)
            pl.BlockSpec((1, 2 * Cp), lambda b, q: (0, 0)),     # kv bias
            pl.BlockSpec((Cp, C), lambda b, q: (0, 0)),         # proj weight (resident)
            pl.BlockSpec((1, C), lambda b, q: (0, 0)),          # proj bias
        ],
        out_specs=pl.BlockSpec((1, tq, C), lambda b, q: (b, q, 0)),
        scratch_shapes=[pltpu.VMEM((N, 2 * Cp), jnp.float32)],  # K|V cache for current batch elem
        compiler_params=pltpu.CompilerParams(
            # batch axis parallel (megacore split); q-tile axis arbitrary because
            # the K/V scratch computed at qi == 0 is reused across its q tiles.
            dimension_semantics=("parallel", "arbitrary"),
            vmem_limit_bytes=64 * 1024 * 1024,
        ),
        cost_estimate=pl.CostEstimate(flops=flops,
                                      transcendentals=transcendentals,
                                      bytes_accessed=bytes_accessed),
    )(x, x, wq, bq, wkv, bkv, wproj, bproj)


# ----------------------------------------------------------------------------
# Reference (plain JAX) for verification
# ----------------------------------------------------------------------------
def attention_reference(params, x, num_heads):
    B, N, C = x.shape
    H = num_heads
    hd = C // H
    scale = hd ** (-0.5)
    x2d = x.reshape(B * N, C)
    qkv = x2d @ params["qkv_w"].T + params["qkv_b"]
    qkv = qkv.reshape(B, N, 3, H, hd).transpose(2, 0, 3, 1, 4)
    q, k, v = qkv[0], qkv[1], qkv[2]
    q = q * scale
    attn = jnp.einsum("bhqd,bhkd->bhqk", q, k)
    attn = jax.nn.softmax(attn, axis=-1)
    o = jnp.einsum("bhqk,bhkd->bhqd", attn, v)
    o = o.transpose(0, 2, 1, 3).reshape(B, N, C)
    out = o.reshape(B * N, C) @ params["proj_w"].T + params["proj_b"]
    return out.reshape(B, N, C)


if __name__ == "__main__":
    key = jax.random.PRNGKey(0)
    kx, kp = jax.random.split(key)

    # Test 1: small shapes matching the module (B, N, C, H) = (2, 8, 32, 4).
    B, N, C, H = 2, 8, 32, 4
    x = jax.random.normal(kx, (B, N, C), dtype=jnp.float32)
    params = init_attention_params(kp, C, H)

    out = jax.block_until_ready(attention_forward(params, x, H))
    ref = attention_reference(params, x, H)
    if not bool(jnp.allclose(out, ref, atol=1e-4, rtol=1e-4)):
        raise AssertionError("Pallas attention does not match reference (test 1)")

    # Test 2: exercise the multi-tile flash path (2 query tiles x 2 KV tiles).
    B2, N2 = 2, 16
    x2 = jax.random.normal(jax.random.PRNGKey(1), (B2, N2, C), dtype=jnp.float32)
    out2 = jax.block_until_ready(
        attention_forward(params, x2, H, q_tile_target=8, kv_tile_target=8))
    ref2 = attention_reference(params, x2, H)
    if not bool(jnp.allclose(out2, ref2, atol=1e-4, rtol=1e-4)):
        raise AssertionError("Pallas attention does not match reference (test 2)")

    print("KERNEL_OK")
</pallas_src>

<mosaic_0001>
module attributes {stable_mosaic.version = 11 : i64} {
  func.func @_fused_attention_kernel(%arg0: i32, %arg1: i32, %arg2: memref<1x8x32xf32, #tpu.memory_space<vmem>>, %arg3: memref<1x8x32xf32, #tpu.memory_space<vmem>>, %arg4: memref<32x512xf32, #tpu.memory_space<vmem>>, %arg5: memref<1x512xf32, #tpu.memory_space<vmem>>, %arg6: memref<32x1024xf32, #tpu.memory_space<vmem>>, %arg7: memref<1x1024xf32, #tpu.memory_space<vmem>>, %arg8: memref<512x32xf32, #tpu.memory_space<vmem>>, %arg9: memref<1x32xf32, #tpu.memory_space<vmem>>, %arg10: memref<1x8x32xf32, #tpu.memory_space<vmem>>, %arg11: memref<8x1024xf32, #tpu.memory_space<vmem>>) attributes {dimension_semantics = [#tpu.dimension_semantics<parallel>, #tpu.dimension_semantics<arbitrary>], iteration_bounds = array<i64: 2, 1>, scalar_prefetch = 0 : i64, scratch_operands = 1 : i64, tpu.core_type = #tpu.core_type<tc>, window_params = [{transform_indices = @transform_0, window_bounds = array<i64: 1, 8, 32>}, {transform_indices = @transform_1, window_bounds = array<i64: 1, 8, 32>}, {pipeline_mode = #tpu.pipeline_mode<synchronous>, transform_indices = @transform_2, window_bounds = array<i64: 32, 512>}, {pipeline_mode = #tpu.pipeline_mode<synchronous>, transform_indices = @transform_3, window_bounds = array<i64: 1, 512>}, {pipeline_mode = #tpu.pipeline_mode<synchronous>, transform_indices = @transform_4, window_bounds = array<i64: 32, 1024>}, {pipeline_mode = #tpu.pipeline_mode<synchronous>, transform_indices = @transform_5, window_bounds = array<i64: 1, 1024>}, {pipeline_mode = #tpu.pipeline_mode<synchronous>, transform_indices = @transform_6, window_bounds = array<i64: 512, 32>}, {pipeline_mode = #tpu.pipeline_mode<synchronous>, transform_indices = @transform_7, window_bounds = array<i64: 1, 32>}, {transform_indices = @transform_8, window_bounds = array<i64: 1, 8, 32>}]} {
    %c0_i32 = arith.constant 0 : i32
    %0 = arith.cmpi eq, %arg1, %c0_i32 : i32
    %1 = arith.extui %0 : i1 to i32
    %c0_i32_0 = arith.constant 0 : i32
    %2 = arith.cmpi ne, %1, %c0_i32_0 : i32
    scf.if %2 {
      %c0_66 = arith.constant 0 : index
      %c0_67 = arith.constant 0 : index
      %c0_68 = arith.constant 0 : index
      %137 = vector.load %arg2[%c0_66, %c0_67, %c0_68] : memref<1x8x32xf32, #tpu.memory_space<vmem>>, vector<1x8x32xf32>
      %138 = vector.shape_cast %137 : vector<1x8x32xf32> to vector<8x32xf32>
      %c0_69 = arith.constant 0 : index
      %c0_70 = arith.constant 0 : index
      %139 = vector.load %arg6[%c0_69, %c0_70] : memref<32x1024xf32, #tpu.memory_space<vmem>>, vector<32x1024xf32>
      %cst_71 = arith.constant dense<0.000000e+00> : vector<8x1024xf32>
      %140 = tpu.matmul %138, %139, %cst_71 {dimension_numbers = #tpu.dot_dimension_numbers<[1], [0], [0], [1], [0, 0, 1, 1], [], []>} : vector<8x32xf32>, vector<32x1024xf32>, vector<8x1024xf32> -> vector<8x1024xf32>
      %c0_72 = arith.constant 0 : index
      %c0_73 = arith.constant 0 : index
      %141 = vector.load %arg7[%c0_72, %c0_73] : memref<1x1024xf32, #tpu.memory_space<vmem>>, vector<1x1024xf32>
      %142 = vector.broadcast %141 : vector<1x1024xf32> to vector<8x1024xf32>
      %143 = arith.addf %140, %142 : vector<8x1024xf32>
      %c0_74 = arith.constant 0 : index
      %c0_75 = arith.constant 0 : index
      %144 = vector.load %arg11[%c0_74, %c0_75] : memref<8x1024xf32, #tpu.memory_space<vmem>>, vector<8x1024xf32>
      tpu.vector_store %arg11[%c0_74, %c0_75], %143 {strides = array<i32>} : memref<8x1024xf32, #tpu.memory_space<vmem>>, vector<8x1024xf32>,
    } else {
    }
    %c0 = arith.constant 0 : index
    %c0_1 = arith.constant 0 : index
    %c0_2 = arith.constant 0 : index
    %3 = vector.load %arg3[%c0, %c0_1, %c0_2] : memref<1x8x32xf32, #tpu.memory_space<vmem>>, vector<1x8x32xf32>
    %4 = vector.shape_cast %3 : vector<1x8x32xf32> to vector<8x32xf32>
    %c0_3 = arith.constant 0 : index
    %c0_4 = arith.constant 0 : index
    %5 = vector.load %arg4[%c0_3, %c0_4] : memref<32x512xf32, #tpu.memory_space<vmem>>, vector<32x512xf32>
    %cst = arith.constant dense<0.000000e+00> : vector<8x512xf32>
    %6 = tpu.matmul %4, %5, %cst {dimension_numbers = #tpu.dot_dimension_numbers<[1], [0], [0], [1], [0, 0, 1, 1], [], []>} : vector<8x32xf32>, vector<32x512xf32>, vector<8x512xf32> -> vector<8x512xf32>
    %c0_5 = arith.constant 0 : index
    %c0_6 = arith.constant 0 : index
    %7 = vector.load %arg5[%c0_5, %c0_6] : memref<1x512xf32, #tpu.memory_space<vmem>>, vector<1x512xf32>
    %8 = vector.broadcast %7 : vector<1x512xf32> to vector<8x512xf32>
    %9 = arith.addf %6, %8 : vector<8x512xf32>
    %cst_7 = arith.constant 0.000000e+00 : f32
    %10 = vector.broadcast %cst_7 : f32 to vector<8x32xf32>
    %c0_8 = arith.constant 0 : index
    %c0_9 = arith.constant 0 : index
    %11 = vector.load %arg9[%c0_8, %c0_9] : memref<1x32xf32, #tpu.memory_space<vmem>>, vector<1x32xf32>
    %12 = vector.broadcast %11 : vector<1x32xf32> to vector<8x32xf32>
    %13 = arith.addf %10, %12 : vector<8x32xf32>
    %14 = vector.extract_strided_slice %9 {offsets = [0, 0], sizes = [8, 128], strides = [1, 1]} : vector<8x512xf32> to vector<8x128xf32>
    %cst_10 = arith.constant 0xFF800000 : f32
    %15 = vector.broadcast %cst_10 : f32 to vector<8x1xf32>
    %cst_11 = arith.constant 0.000000e+00 : f32
    %16 = vector.broadcast %cst_11 : f32 to vector<8x1xf32>
    %cst_12 = arith.constant 0.000000e+00 : f32
    %17 = vector.broadcast %cst_12 : f32 to vector<8x128xf32>
    %c0_13 = arith.constant 0 : index
    %c0_14 = arith.constant 0 : index
    %18 = vector.load %arg11[%c0_13, %c0_14] : memref<8x1024xf32, #tpu.memory_space<vmem>>, vector<8x128xf32>
    %c0_15 = arith.constant 0 : index
    %c512 = arith.constant 512 : index
    %19 = vector.load %arg11[%c0_15, %c512] : memref<8x1024xf32, #tpu.memory_space<vmem>>, vector<8x128xf32>
    %cst_16 = arith.constant dense<0.000000e+00> : vector<8x8xf32>
    %20 = tpu.matmul %14, %18, %cst_16 {dimension_numbers = #tpu.dot_dimension_numbers<[1], [1], [0], [0], [0, 0, 1, 0], [], []>} : vector<8x128xf32>, vector<8x128xf32>, vector<8x8xf32> -> vector<8x8xf32>
    %cst_17 = arith.constant dense<0xFF800000> : vector<8xf32>
    %21 = vector.multi_reduction <maximumf>, %20, %cst_17 [1] : vector<8x8xf32> to vector<8xf32>
    %22 = vector.shape_cast %21 : vector<8xf32> to vector<8x1xf32>
    %23 = arith.maximumf %15, %22 : vector<8x1xf32>
    %24 = arith.subf %15, %23 : vector<8x1xf32>
    %25 = math.exp %24 : vector<8x1xf32>
    %26 = vector.broadcast %23 : vector<8x1xf32> to vector<8x8xf32>
    %27 = arith.subf %20, %26 : vector<8x8xf32>
    %28 = math.exp %27 : vector<8x8xf32>
    %29 = arith.mulf %25, %16 : vector<8x1xf32>
    %cst_18 = arith.constant dense<0.000000e+00> : vector<8xf32>
    %30 = vector.multi_reduction <add>, %28, %cst_18 [1] : vector<8x8xf32> to vector<8xf32>
    %31 = vector.shape_cast %30 : vector<8xf32> to vector<8x1xf32>
    %32 = arith.addf %29, %31 : vector<8x1xf32>
    %33 = vector.broadcast %25 : vector<8x1xf32> to vector<8x128xf32>
    %34 = arith.mulf %33, %17 : vector<8x128xf32>
    %cst_19 = arith.constant dense<0.000000e+00> : vector<8x128xf32>
    %35 = tpu.matmul %28, %19, %cst_19 {dimension_numbers = #tpu.dot_dimension_numbers<[1], [0], [0], [1], [0, 0, 1, 1], [], []>} : vector<8x8xf32>, vector<8x128xf32>, vector<8x128xf32> -> vector<8x128xf32>
    %36 = arith.addf %34, %35 : vector<8x128xf32>
    %cst_20 = arith.constant 1.000000e+00 : f32
    %37 = vector.broadcast %cst_20 : f32 to vector<8x1xf32>
    %38 = arith.divf %37, %32 : vector<8x1xf32>
    %39 = vector.broadcast %38 : vector<8x1xf32> to vector<8x128xf32>
    %40 = arith.mulf %36, %39 : vector<8x128xf32>
    %c0_21 = arith.constant 0 : index
    %c0_22 = arith.constant 0 : index
    %41 = vector.load %arg8[%c0_21, %c0_22] : memref<512x32xf32, #tpu.memory_space<vmem>>, vector<128x32xf32>
    %cst_23 = arith.constant dense<0.000000e+00> : vector<8x32xf32>
    %42 = tpu.matmul %40, %41, %cst_23 {dimension_numbers = #tpu.dot_dimension_numbers<[1], [0], [0], [1], [0, 0, 1, 1], [], []>} : vector<8x128xf32>, vector<128x32xf32>, vector<8x32xf32> -> vector<8x32xf32>
    %43 = arith.addf %13, %42 : vector<8x32xf32>
    %44 = vector.extract_strided_slice %9 {offsets = [0, 128], sizes = [8, 128], strides = [1, 1]} : vector<8x512xf32> to vector<8x128xf32>
    %cst_24 = arith.constant 0xFF800000 : f32
    %45 = vector.broadcast %cst_24 : f32 to vector<8x1xf32>
    %cst_25 = arith.constant 0.000000e+00 : f32
    %46 = vector.broadcast %cst_25 : f32 to vector<8x1xf32>
    %cst_26 = arith.constant 0.000000e+00 : f32
    %47 = vector.broadcast %cst_26 : f32 to vector<8x128xf32>
    %c0_27 = arith.constant 0 : index
    %c128 = arith.constant 128 : index
    %48 = vector.load %arg11[%c0_27, %c128] : memref<8x1024xf32, #tpu.memory_space<vmem>>, vector<8x128xf32>
    %c0_28 = arith.constant 0 : index
    %c640 = arith.constant 640 : index
    %49 = vector.load %arg11[%c0_28, %c640] : memref<8x1024xf32, #tpu.memory_space<vmem>>, vector<8x128xf32>
    %cst_29 = arith.constant dense<0.000000e+00> : vector<8x8xf32>
    %50 = tpu.matmul %44, %48, %cst_29 {dimension_numbers = #tpu.dot_dimension_numbers<[1], [1], [0], [0], [0, 0, 1, 0], [], []>} : vector<8x128xf32>, vector<8x128xf32>, vector<8x8xf32> -> vector<8x8xf32>
    %cst_30 = arith.constant dense<0xFF800000> : vector<8xf32>
    %51 = vector.multi_reduction <maximumf>, %50, %cst_30 [1] : vector<8x8xf32> to vector<8xf32>
    %52 = vector.shape_cast %51 : vector<8xf32> to vector<8x1xf32>
    %53 = arith.maximumf %45, %52 : vector<8x1xf32>
    %54 = arith.subf %45, %53 : vector<8x1xf32>
    %55 = math.exp %54 : vector<8x1xf32>
    %56 = vector.broadcast %53 : vector<8x1xf32> to vector<8x8xf32>
    %57 = arith.subf %50, %56 : vector<8x8xf32>
    %58 = math.exp %57 : vector<8x8xf32>
    %59 = arith.mulf %55, %46 : vector<8x1xf32>
    %cst_31 = arith.constant dense<0.000000e+00> : vector<8xf32>
    %60 = vector.multi_reduction <add>, %58, %cst_31 [1] : vector<8x8xf32> to vector<8xf32>
    %61 = vector.shape_cast %60 : vector<8xf32> to vector<8x1xf32>
    %62 = arith.addf %59, %61 : vector<8x1xf32>
    %63 = vector.broadcast %55 : vector<8x1xf32> to vector<8x128xf32>
    %64 = arith.mulf %63, %47 : vector<8x128xf32>
    %cst_32 = arith.constant dense<0.000000e+00> : vector<8x128xf32>
    %65 = tpu.matmul %58, %49, %cst_32 {dimension_numbers = #tpu.dot_dimension_numbers<[1], [0], [0], [1], [0, 0, 1, 1], [], []>} : vector<8x8xf32>, vector<8x128xf32>, vector<8x128xf32> -> vector<8x128xf32>
    %66 = arith.addf %64, %65 : vector<8x128xf32>
    %cst_33 = arith.constant 1.000000e+00 : f32
    %67 = vector.broadcast %cst_33 : f32 to vector<8x1xf32>
    %68 = arith.divf %67, %62 : vector<8x1xf32>
    %69 = vector.broadcast %68 : vector<8x1xf32> to vector<8x128xf32>
    %70 = arith.mulf %66, %69 : vector<8x128xf32>
    %c128_34 = arith.constant 128 : index
    %c0_35 = arith.constant 0 : index
    %71 = vector.load %arg8[%c128_34, %c0_35] : memref<512x32xf32, #tpu.memory_space<vmem>>, vector<128x32xf32>
    %cst_36 = arith.constant dense<0.000000e+00> : vector<8x32xf32>
    %72 = tpu.matmul %70, %71, %cst_36 {dimension_numbers = #tpu.dot_dimension_numbers<[1], [0], [0], [1], [0, 0, 1, 1], [], []>} : vector<8x128xf32>, vector<128x32xf32>, vector<8x32xf32> -> vector<8x32xf32>
    %73 = arith.addf %43, %72 : vector<8x32xf32>
    %74 = vector.extract_strided_slice %9 {offsets = [0, 256], sizes = [8, 128], strides = [1, 1]} : vector<8x512xf32> to vector<8x128xf32>
    %cst_37 = arith.constant 0xFF800000 : f32
    %75 = vector.broadcast %cst_37 : f32 to vector<8x1xf32>
    %cst_38 = arith.constant 0.000000e+00 : f32
    %76 = vector.broadcast %cst_38 : f32 to vector<8x1xf32>
    %cst_39 = arith.constant 0.000000e+00 : f32
    %77 = vector.broadcast %cst_39 : f32 to vector<8x128xf32>
    %c0_40 = arith.constant 0 : index
    %c256 = arith.constant 256 : index
    %78 = vector.load %arg11[%c0_40, %c256] : memref<8x1024xf32, #tpu.memory_space<vmem>>, vector<8x128xf32>
    %c0_41 = arith.constant 0 : index
    %c768 = arith.constant 768 : index
    %79 = vector.load %arg11[%c0_41, %c768] : memref<8x1024xf32, #tpu.memory_space<vmem>>, vector<8x128xf32>
    %cst_42 = arith.constant dense<0.000000e+00> : vector<8x8xf32>
    %80 = tpu.matmul %74, %78, %cst_42 {dimension_numbers = #tpu.dot_dimension_numbers<[1], [1], [0], [0], [0, 0, 1, 0], [], []>} : vector<8x128xf32>, vector<8x128xf32>, vector<8x8xf32> -> vector<8x8xf32>
    %cst_43 = arith.constant dense<0xFF800000> : vector<8xf32>
    %81 = vector.multi_reduction <maximumf>, %80, %cst_43 [1] : vector<8x8xf32> to vector<8xf32>
    %82 = vector.shape_cast %81 : vector<8xf32> to vector<8x1xf32>
    %83 = arith.maximumf %75, %82 : vector<8x1xf32>
    %84 = arith.subf %75, %83 : vector<8x1xf32>
    %85 = math.exp %84 : vector<8x1xf32>
    %86 = vector.broadcast %83 : vector<8x1xf32> to vector<8x8xf32>
    %87 = arith.subf %80, %86 : vector<8x8xf32>
    %88 = math.exp %87 : vector<8x8xf32>
    %89 = arith.mulf %85, %76 : vector<8x1xf32>
    %cst_44 = arith.constant dense<0.000000e+00> : vector<8xf32>
    %90 = vector.multi_reduction <add>, %88, %cst_44 [1] : vector<8x8xf32> to vector<8xf32>
    %91 = vector.shape_cast %90 : vector<8xf32> to vector<8x1xf32>
    %92 = arith.addf %89, %91 : vector<8x1xf32>
    %93 = vector.broadcast %85 : vector<8x1xf32> to vector<8x128xf32>
    %94 = arith.mulf %93, %77 : vector<8x128xf32>
    %cst_45 = arith.constant dense<0.000000e+00> : vector<8x128xf32>
    %95 = tpu.matmul %88, %79, %cst_45 {dimension_numbers = #tpu.dot_dimension_numbers<[1], [0], [0], [1], [0, 0, 1, 1], [], []>} : vector<8x8xf32>, vector<8x128xf32>, vector<8x128xf32> -> vector<8x128xf32>
    %96 = arith.addf %94, %95 : vector<8x128xf32>
    %cst_46 = arith.constant 1.000000e+00 : f32
    %97 = vector.broadcast %cst_46 : f32 to vector<8x1xf32>
    %98 = arith.divf %97, %92 : vector<8x1xf32>
    %99 = vector.broadcast %98 : vector<8x1xf32> to vector<8x128xf32>
    %100 = arith.mulf %96, %99 : vector<8x128xf32>
    %c256_47 = arith.constant 256 : index
    %c0_48 = arith.constant 0 : index
    %101 = vector.load %arg8[%c256_47, %c0_48] : memref<512x32xf32, #tpu.memory_space<vmem>>, vector<128x32xf32>
    %cst_49 = arith.constant dense<0.000000e+00> : vector<8x32xf32>
    %102 = tpu.matmul %100, %101, %cst_49 {dimension_numbers = #tpu.dot_dimension_numbers<[1], [0], [0], [1], [0, 0, 1, 1], [], []>} : vector<8x128xf32>, vector<128x32xf32>, vector<8x32xf32> -> vector<8x32xf32>
    %103 = arith.addf %73, %102 : vector<8x32xf32>
    %104 = vector.extract_strided_slice %9 {offsets = [0, 384], sizes = [8, 128], strides = [1, 1]} : vector<8x512xf32> to vector<8x128xf32>
    %cst_50 = arith.constant 0xFF800000 : f32
    %105 = vector.broadcast %cst_50 : f32 to vector<8x1xf32>
    %cst_51 = arith.constant 0.000000e+00 : f32
    %106 = vector.broadcast %cst_51 : f32 to vector<8x1xf32>
    %cst_52 = arith.constant 0.000000e+00 : f32
    %107 = vector.broadcast %cst_52 : f32 to vector<8x128xf32>
    %c0_53 = arith.constant 0 : index
    %c384 = arith.constant 384 : index
    %108 = vector.load %arg11[%c0_53, %c384] : memref<8x1024xf32, #tpu.memory_space<vmem>>, vector<8x128xf32>
    %c0_54 = arith.constant 0 : index
    %c896 = arith.constant 896 : index
    %109 = vector.load %arg11[%c0_54, %c896] : memref<8x1024xf32, #tpu.memory_space<vmem>>, vector<8x128xf32>
    %cst_55 = arith.constant dense<0.000000e+00> : vector<8x8xf32>
    %110 = tpu.matmul %104, %108, %cst_55 {dimension_numbers = #tpu.dot_dimension_numbers<[1], [1], [0], [0], [0, 0, 1, 0], [], []>} : vector<8x128xf32>, vector<8x128xf32>, vector<8x8xf32> -> vector<8x8xf32>
    %cst_56 = arith.constant dense<0xFF800000> : vector<8xf32>
    %111 = vector.multi_reduction <maximumf>, %110, %cst_56 [1] : vector<8x8xf32> to vector<8xf32>
    %112 = vector.shape_cast %111 : vector<8xf32> to vector<8x1xf32>
    %113 = arith.maximumf %105, %112 : vector<8x1xf32>
    %114 = arith.subf %105, %113 : vector<8x1xf32>
    %115 = math.exp %114 : vector<8x1xf32>
    %116 = vector.broadcast %113 : vector<8x1xf32> to vector<8x8xf32>
    %117 = arith.subf %110, %116 : vector<8x8xf32>
    %118 = math.exp %117 : vector<8x8xf32>
    %119 = arith.mulf %115, %106 : vector<8x1xf32>
    %cst_57 = arith.constant dense<0.000000e+00> : vector<8xf32>
    %120 = vector.multi_reduction <add>, %118, %cst_57 [1] : vector<8x8xf32> to vector<8xf32>
    %121 = vector.shape_cast %120 : vector<8xf32> to vector<8x1xf32>
    %122 = arith.addf %119, %121 : vector<8x1xf32>
    %123 = vector.broadcast %115 : vector<8x1xf32> to vector<8x128xf32>
    %124 = arith.mulf %123, %107 : vector<8x128xf32>
    %cst_58 = arith.constant dense<0.000000e+00> : vector<8x128xf32>
    %125 = tpu.matmul %118, %109, %cst_58 {dimension_numbers = #tpu.dot_dimension_numbers<[1], [0], [0], [1], [0, 0, 1, 1], [], []>} : vector<8x8xf32>, vector<8x128xf32>, vector<8x128xf32> -> vector<8x128xf32>
    %126 = arith.addf %124, %125 : vector<8x128xf32>
    %cst_59 = arith.constant 1.000000e+00 : f32
    %127 = vector.broadcast %cst_59 : f32 to vector<8x1xf32>
    %128 = arith.divf %127, %122 : vector<8x1xf32>
    %129 = vector.broadcast %128 : vector<8x1xf32> to vector<8x128xf32>
    %130 = arith.mulf %126, %129 : vector<8x128xf32>
    %c384_60 = arith.constant 384 : index
    %c0_61 = arith.constant 0 : index
    %131 = vector.load %arg8[%c384_60, %c0_61] : memref<512x32xf32, #tpu.memory_space<vmem>>, vector<128x32xf32>
    %cst_62 = arith.constant dense<0.000000e+00> : vector<8x32xf32>
    %132 = tpu.matmul %130, %131, %cst_62 {dimension_numbers = #tpu.dot_dimension_numbers<[1], [0], [0], [1], [0, 0, 1, 1], [], []>} : vector<8x128xf32>, vector<128x32xf32>, vector<8x32xf32> -> vector<8x32xf32>
    %133 = arith.addf %103, %132 : vector<8x32xf32>
    %c0_63 = arith.constant 0 : index
    %c0_64 = arith.constant 0 : index
    %c0_65 = arith.constant 0 : index
    %134 = vector.load %arg10[%c0_63, %c0_64, %c0_65] : memref<1x8x32xf32, #tpu.memory_space<vmem>>, vector<1x8x32xf32>
    %135 = vector.shape_cast %134 : vector<1x8x32xf32> to vector<8x32xf32>
    %136 = vector.shape_cast %133 : vector<8x32xf32> to vector<1x8x32xf32>
    tpu.vector_store %arg10[%c0_63, %c0_64, %c0_65], %136 {strides = array<i32>} : memref<1x8x32xf32, #tpu.memory_space<vmem>>, vector<1x8x32xf32>,
    return
  }
  func.func @transform_0(%arg0: i32, %arg1: i32) -> (i32, i32, i32) {
    %c0_i32 = arith.constant 0 : i32
    %c0_i32_0 = arith.constant 0 : i32
    %c0_i32_1 = arith.constant 0 : i32
    return %arg0, %c0_i32, %c0_i32_0 : i32, i32, i32
  }
  func.func @transform_1(%arg0: i32, %arg1: i32) -> (i32, i32, i32) {
    %c0_i32 = arith.constant 0 : i32
    %c0_i32_0 = arith.constant 0 : i32
    return %arg0, %arg1, %c0_i32 : i32, i32, i32
  }
  func.func @transform_2(%arg0: i32, %arg1: i32) -> (i32, i32) {
    %c0_i32 = arith.constant 0 : i32
    %c0_i32_0 = arith.constant 0 : i32
    %c0_i32_1 = arith.constant 0 : i32
    return %c0_i32, %c0_i32_0 : i32, i32
  }
  func.func @transform_3(%arg0: i32, %arg1: i32) -> (i32, i32) {
    %c0_i32 = arith.constant 0 : i32
    %c0_i32_0 = arith.constant 0 : i32
    %c0_i32_1 = arith.constant 0 : i32
    return %c0_i32, %c0_i32_0 : i32, i32
  }
  func.func @transform_4(%arg0: i32, %arg1: i32) -> (i32, i32) {
    %c0_i32 = arith.constant 0 : i32
    %c0_i32_0 = arith.constant 0 : i32
    %c0_i32_1 = arith.constant 0 : i32
    return %c0_i32, %c0_i32_0 : i32, i32
  }
  func.func @transform_5(%arg0: i32, %arg1: i32) -> (i32, i32) {
    %c0_i32 = arith.constant 0 : i32
    %c0_i32_0 = arith.constant 0 : i32
    %c0_i32_1 = arith.constant 0 : i32
    return %c0_i32, %c0_i32_0 : i32, i32
  }
  func.func @transform_6(%arg0: i32, %arg1: i32) -> (i32, i32) {
    %c0_i32 = arith.constant 0 : i32
    %c0_i32_0 = arith.constant 0 : i32
    %c0_i32_1 = arith.constant 0 : i32
    return %c0_i32, %c0_i32_0 : i32, i32
  }
  func.func @transform_7(%arg0: i32, %arg1: i32) -> (i32, i32) {
    %c0_i32 = arith.constant 0 : i32
    %c0_i32_0 = arith.constant 0 : i32
    %c0_i32_1 = arith.constant 0 : i32
    return %c0_i32, %c0_i32_0 : i32, i32
  }
  func.func @transform_8(%arg0: i32, %arg1: i32) -> (i32, i32, i32) {
    %c0_i32 = arith.constant 0 : i32
    %c0_i32_0 = arith.constant 0 : i32
    return %arg0, %arg1, %c0_i32 : i32, i32, i32
  }
}

</mosaic_0001>

<llo_original>
// kernel: tpu_custom_call.1
$region0: #{tpu_custom_call.1}
  #allocation0 [shape = 'u32[]', space=smem, size = 0x4, offset = 0x4, fixed_abs, tag = 'smem constant byte address 0x4 - core index']
  #allocation1 [shape = 'u32[144,128]{1,0:T(1,128)}', space=vmem, size = 0x12000, scoped, tag = 'internal scratch']
  #allocation2 [shape = 'f32[8,1024]{1,0:T(8,128)}', space=vmem, size = 0x8000, scoped, tag = 'scratch operand']
  %s0 = inlined_call_operand.hbm [shape: f32[2,8,32], index: 0, kind: input, shape index: {}]
  %s1 = inlined_call_operand.hbm [shape: f32[2,8,32], index: 1, kind: input, shape index: {}]
  %s2 = inlined_call_operand.hbm [shape: f32[32,512], index: 2, kind: input, shape index: {}]
  %s3 = inlined_call_operand.hbm [shape: f32[1,512], index: 3, kind: input, shape index: {}]
  %s4 = inlined_call_operand.hbm [shape: f32[32,1024], index: 4, kind: input, shape index: {}]
  %s5 = inlined_call_operand.hbm [shape: f32[1,1024], index: 5, kind: input, shape index: {}]
  %s6 = inlined_call_operand.hbm [shape: f32[512,32], index: 6, kind: input, shape index: {}]
  %s7 = inlined_call_operand.hbm [shape: f32[1,32], index: 7, kind: input, shape index: {}]
  %s8 = inlined_call_operand.hbm [shape: f32[2,8,32], index: 8, kind: output, shape index: {}]
  %s9 = sld [smem:[#allocation0]]
  $region101: #{tpu_custom_call.1} parent=0
    _
  %s11 = ssub.s32 1, %s9
  %s12 = scalar_select 0, %s11, %s9
  $region1: #{tpu_custom_call.1} parent=0
    #allocation3 [shape = 'u8[8192]{0}', space=vmem, size = 0x2000, scoped, tag = 'input window, operand 0']
    #allocation4 [shape = 's32[2]{0}', space=sflag, size = 0x8, scoped, tag = 'scoped memory for tpu_custom_call.1']
    #allocation5 [shape = 's32[2]{0}', space=sflag, size = 0x8, scoped, tag = 'scoped memory for tpu_custom_call.1']
    #allocation6 [shape = 'u8[8192]{0}', space=vmem, size = 0x2000, scoped, tag = 'input window, operand 1']
    #allocation7 [shape = 's32[2]{0}', space=sflag, size = 0x8, scoped, tag = 'scoped memory for tpu_custom_call.1']
    #allocation8 [shape = 'u8[65536]{0}', space=vmem, size = 0x10000, scoped, tag = 'input window, operand 2, single buffered']
    #allocation9 [shape = 'u8[2048]{0}', space=vmem, size = 0x800, scoped, tag = 'input window, operand 3, single buffered']
    #allocation10 [shape = 's32[1]{0}', space=sflag, size = 0x4, scoped, tag = 'scoped memory for tpu_custom_call.1']
    #allocation11 [shape = 'u8[131072]{0}', space=vmem, size = 0x20000, scoped, tag = 'input window, operand 4, single buffered']
    #allocation12 [shape = 'u8[4096]{0}', space=vmem, size = 0x1000, scoped, tag = 'input window, operand 5, single buffered']
    #allocation13 [shape = 's32[1]{0}', space=sflag, size = 0x4, scoped, tag = 'scoped memory for tpu_custom_call.1']
    #allocation14 [shape = 'u8[262144]{0}', space=vmem, size = 0x40000, scoped, tag = 'input window, operand 6, single buffered']
    #allocation15 [shape = 'u8[512]{0}', space=vmem, size = 0x400, scoped, tag = 'input window, operand 7, single buffered']
    #allocation16 [shape = 's32[1]{0}', space=sflag, size = 0x4, scoped, tag = 'scoped memory for tpu_custom_call.1']
    #allocation17 [shape = 'u8[8192]{0}', space=vmem, size = 0x2000, scoped, tag = 'output window, operand 0']
    %13 = vsyncpa [#allocation4], 0
    %s14 = scalar_lea.sflag [#allocation4], 1
    %15 = vsyncpa %s14, 0
    %16 = vsyncpa [#allocation7], 0
    %s17 = scalar_lea.sflag [#allocation7], 1
    %18 = vsyncpa %s17, 0
    %19 = vsyncpa [#allocation10], 0
    %20 = vsyncpa [#allocation13], 0
    %21 = vsyncpa [#allocation16], 0
    %22 = vsyncpa [#allocation5], 0
    %s23 = scalar_lea.sflag [#allocation5], 1
    %24 = vsyncpa %s23, 0
    loop: start=0, step=1, limit=4
    $region2: #{tpu_custom_call.1} parent=1 // loop_pre_header
      _
    $region3: #{tpu_custom_call.1} parent=1 // loop_header
      %s26 = sphi 0, %s30
      %p27 = scmp.ge.s32.totalorder %s26, 4
      %s33 = sphi 0, %s45
      %s34 = sphi 0, %s41
      %s35 = sphi 0, %s33
      %s36 = sphi 0, %s34
      %s37 = sphi 0, %s35
      %s38 = sphi 0, %s36
      %s48 = sphi 0, %s50
      %s51 = sphi 0, %s48
      %s52 = sphi 0, %s51
      %s68 = sphi 0, %s52
      %s76 = sphi 0, %s78
      %s79 = sphi 0, %s76
      %s80 = sphi 0, %s79
      %s96 = sphi 0, %s80
      %s100 = sphi 0, %s100
      %s102 = sphi 0, %s100
      %s103 = sphi 0, %s102
      %s117 = sphi 0, %s103
      %s121 = sphi 0, %s121
      %s123 = sphi 0, %s121
      %s124 = sphi 0, %s123
      %s138 = sphi 0, %s124
      %s142 = sphi 0, %s142
      %s144 = sphi 0, %s142
      %s145 = sphi 0, %s144
      %s159 = sphi 0, %s145
      %s163 = sphi 0, %s163
      %s165 = sphi 0, %s163
      %s166 = sphi 0, %s165
      %s180 = sphi 0, %s166
      %s184 = sphi 0, %s184
      %s186 = sphi 0, %s184
      %s187 = sphi 0, %s186
      %s201 = sphi 0, %s187
      %s205 = sphi 0, %s205
      %s207 = sphi 0, %s205
      %s208 = sphi 0, %s207
      %s222 = sphi 0, %s208
      %s230 = sphi 0, %s232
      %s233 = sphi 0, %s230
      %s234 = sphi 0, %s233
      %s250 = sphi 0, %s234
    $region4: #{tpu_custom_call.1} parent=1 // loop_header_branch
      %29 = sbr.rel (%p27) target = $region8
    $region5: #{tpu_custom_call.1} parent=1 // loop_body
      %s31 = ssub.s32 %s26, 1
      %s32 = ssub.s32 %s26, 2
      %s39 = sadd.s32 1, %s34
      %p40 = scmp.ge.s32.totalorder %s39, 1
      %s41 = scalar_select %p40, 0, %s39
      %s42 = sadd.s32 1, %s33
      %s43 = scalar_select %p40, %s42, %s33
      %p44 = scmp.ge.s32.totalorder %s43, 2
      %s45 = scalar_select %p44, 0, %s43
      %s46 = ssub.s32 %s33, %s45
      %p47 = scmp.eq.s32.totalorder %s46, 0
      %s49 = sadd.s32 %s48, 1
      %s50 = scalar_select %p47, %s48, %s49
      %p53 = pneg %p47
      %p54 = scmp.eq.s32.totalorder %s26, 1
      %p55 = por %p53, %p54
      %p56 = scmp.ne.s32.totalorder %s48, %s51
      %p57 = scmp.eq.s32.totalorder %s26, 0
      %p58 = por %p56, %p57
      %p59 = scmp.ne.s32.totalorder %s48, %s51
      %p60 = scmp.eq.s32.totalorder %s31, 1
      %p61 = por %p59, %p60
      %p62 = scmp.ne.s32.totalorder %s51, %s52
      %p63 = scmp.eq.s32.totalorder %s31, 0
      %p64 = por %p62, %p63
      %p65 = scmp.ne.s32.totalorder %s51, %s52
      %p66 = scmp.eq.s32.totalorder %s32, 1
      %p67 = por %p65, %p66
      %p69 = scmp.ne.s32.totalorder %s52, %s68
      %p70 = scmp.eq.s32.totalorder %s32, 0
      %p71 = por %p69, %p70
      %s72 = ssub.s32 %s33, %s45
      %s73 = ssub.s32 %s34, %s41
      %s74 = sor.u32 %s72, %s73
      %p75 = scmp.eq.s32.totalorder %s74, 0
      %s77 = sadd.s32 %s76, 1
      %s78 = scalar_select %p75, %s76, %s77
      %p81 = pneg %p75
      %p82 = scmp.eq.s32.totalorder %s26, 1
      %p83 = por %p81, %p82
      %p84 = scmp.ne.s32.totalorder %s76, %s79
      %p85 = scmp.eq.s32.totalorder %s26, 0
      %p86 = por %p84, %p85
      %p87 = scmp.ne.s32.totalorder %s76, %s79
      %p88 = scmp.eq.s32.totalorder %s31, 1
      %p89 = por %p87, %p88
      %p90 = scmp.ne.s32.totalorder %s79, %s80
      %p91 = scmp.eq.s32.totalorder %s31, 0
      %p92 = por %p90, %p91
      %p93 = scmp.ne.s32.totalorder %s79, %s80
      %p94 = scmp.eq.s32.totalorder %s32, 1
      %p95 = por %p93, %p94
      %p97 = scmp.ne.s32.totalorder %s80, %s96
      %p98 = scmp.eq.s32.totalorder %s32, 0
      %p99 = por %p97, %p98
      %s101 = sadd.s32 %s100, 1
      %p104 = scmp.eq.s32.totalorder %s26, 1
      %p105 = scmp.ne.s32.totalorder %s100, %s102
      %p106 = scmp.eq.s32.totalorder %s26, 0
      %p107 = por %p105, %p106
      %p108 = scmp.ne.s32.totalorder %s100, %s102
      %p109 = scmp.eq.s32.totalorder %s31, 1
      %p110 = por %p108, %p109
      %p111 = scmp.ne.s32.totalorder %s102, %s103
      %p112 = scmp.eq.s32.totalorder %s31, 0
      %p113 = por %p111, %p112
      %p114 = scmp.ne.s32.totalorder %s102, %s103
      %p115 = scmp.eq.s32.totalorder %s32, 1
      %p116 = por %p114, %p115
      %p118 = scmp.ne.s32.totalorder %s103, %s117
      %p119 = scmp.eq.s32.totalorder %s32, 0
      %p120 = por %p118, %p119
      %s122 = sadd.s32 %s121, 1
      %p125 = scmp.eq.s32.totalorder %s26, 1
      %p126 = scmp.ne.s32.totalorder %s121, %s123
      %p127 = scmp.eq.s32.totalorder %s26, 0
      %p128 = por %p126, %p127
      %p129 = scmp.ne.s32.totalorder %s121, %s123
      %p130 = scmp.eq.s32.totalorder %s31, 1
      %p131 = por %p129, %p130
      %p132 = scmp.ne.s32.totalorder %s123, %s124
      %p133 = scmp.eq.s32.totalorder %s31, 0
      %p134 = por %p132, %p133
      %p135 = scmp.ne.s32.totalorder %s123, %s124
      %p136 = scmp.eq.s32.totalorder %s32, 1
      %p137 = por %p135, %p136
      %p139 = scmp.ne.s32.totalorder %s124, %s138
      %p140 = scmp.eq.s32.totalorder %s32, 0
      %p141 = por %p139, %p140
      %s143 = sadd.s32 %s142, 1
      %p146 = scmp.eq.s32.totalorder %s26, 1
      %p147 = scmp.ne.s32.totalorder %s142, %s144
      %p148 = scmp.eq.s32.totalorder %s26, 0
      %p149 = por %p147, %p148
      %p150 = scmp.ne.s32.totalorder %s142, %s144
      %p151 = scmp.eq.s32.totalorder %s31, 1
      %p152 = por %p150, %p151
      %p153 = scmp.ne.s32.totalorder %s144, %s145
      %p154 = scmp.eq.s32.totalorder %s31, 0
      %p155 = por %p153, %p154
      %p156 = scmp.ne.s32.totalorder %s144, %s145
      %p157 = scmp.eq.s32.totalorder %s32, 1
      %p158 = por %p156, %p157
      %p160 = scmp.ne.s32.totalorder %s145, %s159
      %p161 = scmp.eq.s32.totalorder %s32, 0
      %p162 = por %p160, %p161
      %s164 = sadd.s32 %s163, 1
      %p167 = scmp.eq.s32.totalorder %s26, 1
      %p168 = scmp.ne.s32.totalorder %s163, %s165
      %p169 = scmp.eq.s32.totalorder %s26, 0
      %p170 = por %p168, %p169
      %p171 = scmp.ne.s32.totalorder %s163, %s165
      %p172 = scmp.eq.s32.totalorder %s31, 1
      %p173 = por %p171, %p172
      %p174 = scmp.ne.s32.totalorder %s165, %s166
      %p175 = scmp.eq.s32.totalorder %s31, 0
      %p176 = por %p174, %p175
      %p177 = scmp.ne.s32.totalorder %s165, %s166
      %p178 = scmp.eq.s32.totalorder %s32, 1
      %p179 = por %p177, %p178
      %p181 = scmp.ne.s32.totalorder %s166, %s180
      %p182 = scmp.eq.s32.totalorder %s32, 0
      %p183 = por %p181, %p182
      %s185 = sadd.s32 %s184, 1
      %p188 = scmp.eq.s32.totalorder %s26, 1
      %p189 = scmp.ne.s32.totalorder %s184, %s186
      %p190 = scmp.eq.s32.totalorder %s26, 0
      %p191 = por %p189, %p190
      %p192 = scmp.ne.s32.totalorder %s184, %s186
      %p193 = scmp.eq.s32.totalorder %s31, 1
      %p194 = por %p192, %p193
      %p195 = scmp.ne.s32.totalorder %s186, %s187
      %p196 = scmp.eq.s32.totalorder %s31, 0
      %p197 = por %p195, %p196
      %p198 = scmp.ne.s32.totalorder %s186, %s187
      %p199 = scmp.eq.s32.totalorder %s32, 1
      %p200 = por %p198, %p199
      %p202 = scmp.ne.s32.totalorder %s187, %s201
      %p203 = scmp.eq.s32.totalorder %s32, 0
      %p204 = por %p202, %p203
      %s206 = sadd.s32 %s205, 1
      %p209 = scmp.eq.s32.totalorder %s26, 1
      %p210 = scmp.ne.s32.totalorder %s205, %s207
      %p211 = scmp.eq.s32.totalorder %s26, 0
      %p212 = por %p210, %p211
      %p213 = scmp.ne.s32.totalorder %s205, %s207
      %p214 = scmp.eq.s32.totalorder %s31, 1
      %p215 = por %p213, %p214
      %p216 = scmp.ne.s32.totalorder %s207, %s208
      %p217 = scmp.eq.s32.totalorder %s31, 0
      %p218 = por %p216, %p217
      %p219 = scmp.ne.s32.totalorder %s207, %s208
      %p220 = scmp.eq.s32.totalorder %s32, 1
      %p221 = por %p219, %p220
      %p223 = scmp.ne.s32.totalorder %s208, %s222
      %p224 = scmp.eq.s32.totalorder %s32, 0
      %p225 = por %p223, %p224
      %s226 = ssub.s32 %s33, %s45
      %s227 = ssub.s32 %s34, %s41
      %s228 = sor.u32 %s226, %s227
      %p229 = scmp.eq.s32.totalorder %s228, 0
      %s231 = sadd.s32 %s230, 1
      %s232 = scalar_select %p229, %s230, %s231
      %p235 = pneg %p229
      %p236 = scmp.eq.s32.totalorder %s26, 1
      %p237 = por %p235, %p236
      %p238 = scmp.ne.s32.totalorder %s230, %s233
      %p239 = scmp.eq.s32.totalorder %s26, 0
      %p240 = por %p238, %p239
      %p241 = scmp.ne.s32.totalorder %s230, %s233
      %p242 = scmp.eq.s32.totalorder %s31, 1
      %p243 = por %p241, %p242
      %p244 = scmp.ne.s32.totalorder %s233, %s234
      %p245 = scmp.eq.s32.totalorder %s31, 0
      %p246 = por %p244, %p245
      %p247 = scmp.ne.s32.totalorder %s233, %s234
      %p248 = scmp.eq.s32.totalorder %s32, 1
      %p249 = por %p247, %p248
      %p251 = scmp.ne.s32.totalorder %s234, %s250
      %p252 = scmp.eq.s32.totalorder %s32, 0
      %p253 = por %p251, %p252
      %p254 = scmp.le.s32.totalorder 1, %s26
      %p255 = scmp.lt.s32.totalorder %s26, 3
      %p256 = pnand %p254, %p255
      %p257 = pneg %p256
      // Predicated region
      $region9: #{tpu_custom_call.1} parent=5 // pred_check
        _
      $region10: #{tpu_custom_call.1} parent=5 // pred_check_branch
        %259 = sbr.rel (%p256) target = $region12
      $region11: #{tpu_custom_call.1} parent=5 // pred_region
        %s260 = ssub.s32 %s26, 1
        // Predicated region
        $region13: #{tpu_custom_call.1} parent=11 // pred_check
          %p261 = pneg %p113
        $region14: #{tpu_custom_call.1} parent=11 // pred_check_branch
          %263 = sbr.rel (%p261) target = $region16
        $region15: #{tpu_custom_call.1} parent=11 // pred_region
          %s265 = ssub.s32 2048, 2048
          %266 = vsyncadd [#allocation7], %s265
          %s267 = sshll.u32 [#allocation8], 4
          %s268 = int_to_ptr.vmem [resolvable:$true] %s267
          %273 = dma.hbm_to_vmem [thread:$0]  %s2, 2048, %s268, [#allocation7], 512, 512, 32
        $region16: #{tpu_custom_call.1} parent=11 // pred_fallthru
          _
        // Predicated region
        $region17: #{tpu_custom_call.1} parent=11 // pred_check
          %p274 = pneg %p134
        $region18: #{tpu_custom_call.1} parent=11 // pred_check_branch
          %276 = sbr.rel (%p274) target = $region20
        $region19: #{tpu_custom_call.1} parent=11 // pred_region
          %s278 = ssub.s32 64, 64
          %279 = vsyncadd [#allocation10], %s278
          %s281 = sshll.u32 [#allocation9], 4
          %s282 = int_to_ptr.vmem [resolvable:$true] %s281
          %284 = dma.hbm_to_vmem [thread:$0]  %s3, 64, %s282, [#allocation10]
        $region20: #{tpu_custom_call.1} parent=11 // pred_fallthru
          _
        // Predicated region
        $region21: #{tpu_custom_call.1} parent=11 // pred_check
          %p285 = pneg %p155
        $region22: #{tpu_custom_call.1} parent=11 // pred_check_branch
          %287 = sbr.rel (%p285) target = $region24
        $region23: #{tpu_custom_call.1} parent=11 // pred_region
          %s289 = ssub.s32 4096, 4096
          %290 = vsyncadd [#allocation10], %s289
          %s291 = sshll.u32 [#allocation11], 4
          %s292 = int_to_ptr.vmem [resolvable:$true] %s291
          %297 = dma.hbm_to_vmem [thread:$0]  %s4, 4096, %s292, [#allocation10], 1024, 1024, 64
        $region24: #{tpu_custom_call.1} parent=11 // pred_fallthru
          _
        // Predicated region
        $region25: #{tpu_custom_call.1} parent=11 // pred_check
          %p298 = pneg %p176
        $region26: #{tpu_custom_call.1} parent=11 // pred_check_branch
          %300 = sbr.rel (%p298) target = $region28
        $region27: #{tpu_custom_call.1} parent=11 // pred_region
          %s302 = ssub.s32 128, 128
          %303 = vsyncadd [#allocation13], %s302
          %s305 = sshll.u32 [#allocation12], 4
          %s306 = int_to_ptr.vmem [resolvable:$true] %s305
          %308 = dma.hbm_to_vmem [thread:$0]  %s5, 128, %s306, [#allocation13]
        $region28: #{tpu_custom_call.1} parent=11 // pred_fallthru
          _
        // Predicated region
        $region29: #{tpu_custom_call.1} parent=11 // pred_check
          %p309 = pneg %p197
        $region30: #{tpu_custom_call.1} parent=11 // pred_check_branch
          %311 = sbr.rel (%p309) target = $region32
        $region31: #{tpu_custom_call.1} parent=11 // pred_region
          %s313 = ssub.s32 8192, 8192
          %314 = vsyncadd [#allocation13], %s313
          %s315 = sshll.u32 [#allocation14], 4
          %s316 = int_to_ptr.vmem [resolvable:$true] %s315
          %321 = dma.hbm_to_vmem [thread:$0]  %s6, 8192, %s316, [#allocation13], 128, 128, 8
        $region32: #{tpu_custom_call.1} parent=11 // pred_fallthru
          _
        // Predicated region
        $region33: #{tpu_custom_call.1} parent=11 // pred_check
          %p322 = pneg %p218
        $region34: #{tpu_custom_call.1} parent=11 // pred_check_branch
          %324 = sbr.rel (%p322) target = $region36
        $region35: #{tpu_custom_call.1} parent=11 // pred_region
          %s326 = ssub.s32 16, 16
          %327 = vsyncadd [#allocation16], %s326
          %s329 = sshll.u32 [#allocation15], 4
          %s330 = int_to_ptr.vmem [resolvable:$true] %s329
          %332 = dma.hbm_to_vmem [thread:$0]  %s7, 16, %s330, [#allocation16]
        $region36: #{tpu_custom_call.1} parent=11 // pred_fallthru
          _
      $region12: #{tpu_custom_call.1} parent=5 // pred_fallthru
        _
      %p333 = scmp.lt.s32.totalorder %s26, 2
      // Predicated region
      $region37: #{tpu_custom_call.1} parent=5 // pred_check
        %p334 = pneg %p333
      $region38: #{tpu_custom_call.1} parent=5 // pred_check_branch
        %336 = sbr.rel (%p334) target = $region40
      $region39: #{tpu_custom_call.1} parent=5 // pred_region
        // Predicated region
        $region41: #{tpu_custom_call.1} parent=39 // pred_check
          %p337 = pneg %p58
        $region42: #{tpu_custom_call.1} parent=39 // pred_check_branch
          %339 = sbr.rel (%p337) target = $region44
        $region43: #{tpu_custom_call.1} parent=39 // pred_region
          %s340 = sand.u32 %s48, 1
          %s341 = scalar_lea.sflag [#allocation4], %s340
          %s342 = sand.u32 %s48, 1
          %s343 = smul.addr %s342, 8
          %s344 = scalar_lea.vmem [#allocation3], %s343
          %s346 = ssub.s32 128, 128
          %347 = vsyncadd %s341, %s346
          %s348 = smul.addr %s33, 128
          %s349 = scalar_lea.hbm %s0, %s348
          %s351 = sshll.u32 %s344, 4
          %s352 = int_to_ptr.vmem [resolvable:$true] %s351
          %354 = dma.hbm_to_vmem [thread:$0]  %s349, 128, %s352, %s341
        $region44: #{tpu_custom_call.1} parent=39 // pred_fallthru
          _
        // Predicated region
        $region45: #{tpu_custom_call.1} parent=39 // pred_check
          %p355 = pneg %p86
        $region46: #{tpu_custom_call.1} parent=39 // pred_check_branch
          %357 = sbr.rel (%p355) target = $region48
        $region47: #{tpu_custom_call.1} parent=39 // pred_region
          %s358 = sand.u32 %s26, 1
          %s359 = scalar_lea.sflag [#allocation7], %s358
          %s360 = sand.u32 %s76, 1
          %s361 = smul.addr %s360, 8
          %s362 = scalar_lea.vmem [#allocation6], %s361
          %s364 = ssub.s32 128, 128
          %365 = vsyncadd %s359, %s364
          %s366 = sadd.s32 %s34, %s33
          %s367 = smul.addr %s366, 128
          %s368 = scalar_lea.hbm %s1, %s367
          %s370 = sshll.u32 %s362, 4
          %s371 = int_to_ptr.vmem [resolvable:$true] %s370
          %373 = dma.hbm_to_vmem [thread:$0]  %s368, 128, %s371, %s359
        $region48: #{tpu_custom_call.1} parent=39 // pred_fallthru
          _
      $region40: #{tpu_custom_call.1} parent=5 // pred_fallthru
        _
      %p374 = scmp.le.s32.totalorder 1, %s26
      %p375 = scmp.lt.s32.totalorder %s26, 3
      %p376 = pnand %p374, %p375
      %p377 = pneg %p376
      // Predicated region
      $region49: #{tpu_custom_call.1} parent=5 // pred_check
        _
      $region50: #{tpu_custom_call.1} parent=5 // pred_check_branch
        %379 = sbr.rel (%p376) target = $region52
      $region51: #{tpu_custom_call.1} parent=5 // pred_region
        %s380 = ssub.s32 %s26, 1
        %s381 = sand.u32 %s51, 1
        %s382 = scalar_lea.sflag [#allocation4], %s381
        %s383 = sand.u32 %s51, 1
        %s384 = smul.addr %s383, 8
        %s385 = scalar_lea.vmem [#allocation3], %s384
        // Predicated region
        $region53: #{tpu_custom_call.1} parent=51 // pred_check
          %p386 = pneg %p64
        $region54: #{tpu_custom_call.1} parent=51 // pred_check_branch
          %388 = sbr.rel (%p386) target = $region56
        $region55: #{tpu_custom_call.1} parent=51 // pred_region
          %389 = dma.done %s382, 128
        $region56: #{tpu_custom_call.1} parent=51 // pred_fallthru
          _
        %s390 = sand.u32 %s31, 1
        %s391 = scalar_lea.sflag [#allocation7], %s390
        %s392 = sand.u32 %s79, 1
        %s393 = smul.addr %s392, 8
        %s394 = scalar_lea.vmem [#allocation6], %s393
        // Predicated region
        $region57: #{tpu_custom_call.1} parent=51 // pred_check
          %p395 = pneg %p92
        $region58: #{tpu_custom_call.1} parent=51 // pred_check_branch
          %397 = sbr.rel (%p395) target = $region60
        $region59: #{tpu_custom_call.1} parent=51 // pred_region
          %398 = dma.done %s391, 128
        $region60: #{tpu_custom_call.1} parent=51 // pred_fallthru
          _
        // Predicated region
        $region61: #{tpu_custom_call.1} parent=51 // pred_check
          %p399 = pneg %p113
        $region62: #{tpu_custom_call.1} parent=51 // pred_check_branch
          %401 = sbr.rel (%p399) target = $region64
        $region63: #{tpu_custom_call.1} parent=51 // pred_region
          %402 = dma.done [#allocation7], 2048
        $region64: #{tpu_custom_call.1} parent=51 // pred_fallthru
          _
        // Predicated region
        $region65: #{tpu_custom_call.1} parent=51 // pred_check
          %p403 = pneg %p134
        $region66: #{tpu_custom_call.1} parent=51 // pred_check_branch
          %405 = sbr.rel (%p403) target = $region68
        $region67: #{tpu_custom_call.1} parent=51 // pred_region
          %406 = dma.done [#allocation10], 64
        $region68: #{tpu_custom_call.1} parent=51 // pred_fallthru
          _
        // Predicated region
        $region69: #{tpu_custom_call.1} parent=51 // pred_check
          %p407 = pneg %p155
        $region70: #{tpu_custom_call.1} parent=51 // pred_check_branch
          %409 = sbr.rel (%p407) target = $region72
        $region71: #{tpu_custom_call.1} parent=51 // pred_region
          %410 = dma.done [#allocation10], 4096
        $region72: #{tpu_custom_call.1} parent=51 // pred_fallthru
          _
        // Predicated region
        $region73: #{tpu_custom_call.1} parent=51 // pred_check
          %p411 = pneg %p176
        $region74: #{tpu_custom_call.1} parent=51 // pred_check_branch
          %413 = sbr.rel (%p411) target = $region76
        $region75: #{tpu_custom_call.1} parent=51 // pred_region
          %414 = dma.done [#allocation13], 128
        $region76: #{tpu_custom_call.1} parent=51 // pred_fallthru
          _
        // Predicated region
        $region77: #{tpu_custom_call.1} parent=51 // pred_check
          %p415 = pneg %p197
        $region78: #{tpu_custom_call.1} parent=51 // pred_check_branch
          %417 = sbr.rel (%p415) target = $region80
        $region79: #{tpu_custom_call.1} parent=51 // pred_region
          %418 = dma.done [#allocation13], 8192
        $region80: #{tpu_custom_call.1} parent=51 // pred_fallthru
          _
        // Predicated region
        $region81: #{tpu_custom_call.1} parent=51 // pred_check
          %p419 = pneg %p218
        $region82: #{tpu_custom_call.1} parent=51 // pred_check_branch
          %421 = sbr.rel (%p419) target = $region84
        $region83: #{tpu_custom_call.1} parent=51 // pred_region
          %422 = dma.done [#allocation16], 16
        $region84: #{tpu_custom_call.1} parent=51 // pred_fallthru
          _
        %s423 = sand.u32 %s51, 1
        %s424 = scalar_lea.sflag [#allocation4], %s423
        %s425 = sand.u32 %s51, 1
        %s426 = smul.addr %s425, 8
        %s427 = scalar_lea.vmem [#allocation3], %s426
        %p428 = pneg %p64
        %p429 = pneg %p61
        %s430 = sand.u32 %s31, 1
        %s431 = scalar_lea.sflag [#allocation7], %s430
        %s432 = sand.u32 %s79, 1
        %s433 = smul.addr %s432, 8
        %s434 = scalar_lea.vmem [#allocation6], %s433
        %p435 = pneg %p92
        %p436 = pneg %p89
        %p437 = pneg %p113
        %p438 = pneg %p110
        %p439 = pneg %p134
        %p440 = pneg %p131
        %p441 = pneg %p155
        %p442 = pneg %p152
        %p443 = pneg %p176
        %p444 = pneg %p173
        %p445 = pneg %p197
        %p446 = pneg %p194
        %p447 = pneg %p218
        %p448 = pneg %p215
        %p449 = pneg %p246
        %p450 = pneg %p243
        %s451 = sand.u32 %s233, 1
        %s452 = scalar_lea.sflag [#allocation5], %s451
        %s453 = sand.u32 %s233, 1
        %s454 = smul.addr %s453, 8
        %s455 = scalar_lea.vmem [#allocation17], %s454
        %p456 = scmp.eq.s32.totalorder %s36, 0
        // Predicated region
        $region85: #{tpu_custom_call.1} parent=51 // pred_check
          %p457 = pneg %p456
        $region86: #{tpu_custom_call.1} parent=51 // pred_check_branch
          %459 = sbr.rel (%p457) target = $region88
        $region87: #{tpu_custom_call.1} parent=51 // pred_region
          %v460 = vld [vmem:[%s385] sm:$0xff]
          %v461 = vld [vmem:[#allocation11] sm:$0xff]
          %v462 = vld [vmem:[#allocation11 + $0x8] sm:$0xff]
          %v463 = vld [vmem:[#allocation11 + $0x10] sm:$0xff]
          %v464 = vld [vmem:[#allocation11 + $0x18] sm:$0xff]
          %v465 = vld [vmem:[#allocation11 + $0x20] sm:$0xff]
          %v466 = vld [vmem:[#allocation11 + $0x28] sm:$0xff]
          %v467 = vld [vmem:[#allocation11 + $0x30] sm:$0xff]
          %v468 = vld [vmem:[#allocation11 + $0x38] sm:$0xff]
          %v469 = vld [vmem:[#allocation11 + $0x40] sm:$0xff]
          %v470 = vld [vmem:[#allocation11 + $0x48] sm:$0xff]
          %v471 = vld [vmem:[#allocation11 + $0x50] sm:$0xff]
          %v472 = vld [vmem:[#allocation11 + $0x58] sm:$0xff]
          %v473 = vld [vmem:[#allocation11 + $0x60] sm:$0xff]
          %v474 = vld [vmem:[#allocation11 + $0x68] sm:$0xff]
          %v475 = vld [vmem:[#allocation11 + $0x70] sm:$0xff]
          %v476 = vld [vmem:[#allocation11 + $0x78] sm:$0xff]
          %v477 = vld [vmem:[#allocation11 + $0x80] sm:$0xff]
          %v478 = vld [vmem:[#allocation11 + $0x88] sm:$0xff]
          %v479 = vld [vmem:[#allocation11 + $0x90] sm:$0xff]
          %v480 = vld [vmem:[#allocation11 + $0x98] sm:$0xff]
          %v481 = vld [vmem:[#allocation11 + $0xa0] sm:$0xff]
          %v482 = vld [vmem:[#allocation11 + $0xa8] sm:$0xff]
          %v483 = vld [vmem:[#allocation11 + $0xb0] sm:$0xff]
          %v484 = vld [vmem:[#allocation11 + $0xb8] sm:$0xff]
          %v485 = vld [vmem:[#allocation11 + $0xc0] sm:$0xff]
          %v486 = vld [vmem:[#allocation11 + $0xc8] sm:$0xff]
          %v487 = vld [vmem:[#allocation11 + $0xd0] sm:$0xff]
          %v488 = vld [vmem:[#allocation11 + $0xd8] sm:$0xff]
          %v489 = vld [vmem:[#allocation11 + $0xe0] sm:$0xff]
          %v490 = vld [vmem:[#allocation11 + $0xe8] sm:$0xff]
          %v491 = vld [vmem:[#allocation11 + $0xf0] sm:$0xff]
          %v492 = vld [vmem:[#allocation11 + $0xf8] sm:$0xff]
          %v493 = vld [vmem:[#allocation12] sm:$0xff]
          %v495 = vlaneseq
          %v496 = vshrl.u32 %v495, 7
          %v497 = vsub.s32 0, %v496
          %v498 = vrot.slane %v493, %v497
          %v499 = vlaneseq
          %v500 = vshrl.u32 %v499, 7
          %v501 = vsub.s32 1, %v500
          %v502 = vrot.slane %v493, %v501
          %v503 = vlaneseq
          %v504 = vshrl.u32 %v503, 7
          %v505 = vsub.s32 2, %v504
          %v506 = vrot.slane %v493, %v505
          %v507 = vlaneseq
          %v508 = vshrl.u32 %v507, 7
          %v509 = vsub.s32 3, %v508
          %v510 = vrot.slane %v493, %v509
          %v511 = vlaneseq
          %v512 = vshrl.u32 %v511, 7
          %v513 = vsub.s32 4, %v512
          %v514 = vrot.slane %v493, %v513
          %v515 = vlaneseq
          %v516 = vshrl.u32 %v515, 7
          %v517 = vsub.s32 5, %v516
          %v518 = vrot.slane %v493, %v517
          %v519 = vlaneseq
          %v520 = vshrl.u32 %v519, 7
          %v521 = vsub.s32 6, %v520
          %v522 = vrot.slane %v493, %v521
          %v523 = vlaneseq
          %v524 = vshrl.u32 %v523, 7
          %v525 = vsub.s32 7, %v524
          %v526 = vrot.slane %v493, %v525
          %vm535 = vcmask 261120
          %v537 = vsel %vm535, %v460, 0
          %539 = vmatprep.subr.mxu0 %v462
          %540 = vmatpush1.msra.mxu0 %v461
          %541 = vmatprep.subr.mxu0 %v470
          %542 = vmatpush1.msra.mxu0 %v469
          %543 = vmatprep.subr.mxu0 %v478
          %544 = vmatpush1.msra.mxu0 %v477
          %545 = vmatprep.subr.mxu0 %v486
          %546 = vmatpush1.msra.mxu0 %v485
          %547 = vmatprep.subr.mxu0 0.0
          %548 = vmatpush1.msra.mxu0 0.0
          %549 = vmatprep.subr.mxu0 0.0
          %550 = vmatpush1.msra.mxu0 0.0
          %551 = vmatprep.subr.mxu0 0.0
          %552 = vmatpush1.msra.mxu0 0.0
          %553 = vmatprep.subr.mxu0 0.0
          %554 = vmatpush1.msra.mxu0 0.0
          %555 = vmatprep.subr.mxu0 0.0
          %556 = vmatpush1.msra.mxu0 0.0
          %557 = vmatprep.subr.mxu0 0.0
          %558 = vmatpush1.msra.mxu0 0.0
          %559 = vmatprep.subr.mxu0 0.0
          %560 = vmatpush1.msra.mxu0 0.0
          %561 = vmatprep.subr.mxu0 0.0
          %562 = vmatpush1.msra.mxu0 0.0
          %563 = vmatprep.subr.mxu0 0.0
          %564 = vmatpush1.msra.mxu0 0.0
          %565 = vmatprep.subr.mxu0 0.0
          %566 = vmatpush1.msra.mxu0 0.0
          %567 = vmatprep.subr.mxu0 0.0
          %568 = vmatpush1.msra.mxu0 0.0
          %569 = vmatprep.subr.mxu0 0.0
          %570 = vmatpush1.msra.mxu0 0.0
          %571 = vmatprep.subr.mxu0 0.0
          %572 = vmatpush1.msra.mxu0 0.0
          %573 = vmatprep.subr.mxu0 0.0
          %574 = vmatpush1.msra.mxu0 0.0
          %575 = vmatprep.subr.mxu0 0.0
          %576 = vmatpush1.msra.mxu0 0.0
          %577 = vmatprep.subr.mxu0 0.0
          %578 = vmatpush1.msra.mxu0 0.0
          %579 = vmatprep.subr.mxu0 0.0
          %580 = vmatpush1.msra.mxu0 0.0
          %581 = vmatprep.subr.mxu0 0.0
          %582 = vmatpush1.msra.mxu0 0.0
          %583 = vmatprep.subr.mxu0 0.0
          %584 = vmatpush1.msra.mxu0 0.0
          %585 = vmatprep.subr.mxu0 0.0
          %586 = vmatpush1.msra.mxu0 0.0
          %587 = vmatprep.subr.mxu0 0.0
          %588 = vmatpush1.msra.mxu0 0.0
          %589 = vmatprep.subr.mxu0 0.0
          %590 = vmatpush1.msra.mxu0 0.0
          %591 = vmatprep.subr.mxu0 0.0
          %592 = vmatpush1.msra.mxu0 0.0
          %593 = vmatprep.subr.mxu0 0.0
          %594 = vmatpush1.msra.mxu0 0.0
          %595 = vmatprep.subr.mxu0 0.0
          %596 = vmatpush1.msra.mxu0 0.0
          %597 = vmatprep.subr.mxu0 0.0
          %598 = vmatpush1.msra.mxu0 0.0
          %599 = vmatprep.subr.mxu0 0.0
          %600 = vmatpush1.msra.mxu0 0.0
          %601 = vmatprep.subr.mxu0 0.0
          %602 = vmatpush1.msra.mxu0 0.0
          %603 = vmatprep.mubr.f32.mxu0 0.0
          %604 = vmatmul.mubr.f32.gmra.mrb[0].mxu0 %v537
          %v605 = vpop.f32.mrb[0].mxu0
          %v606 = vadd.f32 %v498, %v605
          %v607 = vpop.f32.mrb[0].mxu0
          %v608 = vadd.f32 %v502, %v607
          %609 = vdwg.mxu0
          %610 = vmatprep.subr.mxu0 %v464
          %611 = vmatpush1.msra.mxu0 %v463
          %612 = vmatprep.subr.mxu0 %v472
          %613 = vmatpush1.msra.mxu0 %v471
          %614 = vmatprep.subr.mxu0 %v480
          %615 = vmatpush1.msra.mxu0 %v479
          %616 = vmatprep.subr.mxu0 %v488
          %617 = vmatpush1.msra.mxu0 %v487
          %618 = vmatprep.subr.mxu0 0.0
          %619 = vmatpush1.msra.mxu0 0.0
          %620 = vmatprep.subr.mxu0 0.0
          %621 = vmatpush1.msra.mxu0 0.0
          %622 = vmatprep.subr.mxu0 0.0
          %623 = vmatpush1.msra.mxu0 0.0
          %624 = vmatprep.subr.mxu0 0.0
          %625 = vmatpush1.msra.mxu0 0.0
          %626 = vmatprep.subr.mxu0 0.0
          %627 = vmatpush1.msra.mxu0 0.0
          %628 = vmatprep.subr.mxu0 0.0
          %629 = vmatpush1.msra.mxu0 0.0
          %630 = vmatprep.subr.mxu0 0.0
          %631 = vmatpush1.msra.mxu0 0.0
          %632 = vmatprep.subr.mxu0 0.0
          %633 = vmatpush1.msra.mxu0 0.0
          %634 = vmatprep.subr.mxu0 0.0
          %635 = vmatpush1.msra.mxu0 0.0
          %636 = vmatprep.subr.mxu0 0.0
          %637 = vmatpush1.msra.mxu0 0.0
          %638 = vmatprep.subr.mxu0 0.0
          %639 = vmatpush1.msra.mxu0 0.0
          %640 = vmatprep.subr.mxu0 0.0
          %641 = vmatpush1.msra.mxu0 0.0
          %642 = vmatprep.subr.mxu0 0.0
          %643 = vmatpush1.msra.mxu0 0.0
          %644 = vmatprep.subr.mxu0 0.0
          %645 = vmatpush1.msra.mxu0 0.0
          %646 = vmatprep.subr.mxu0 0.0
          %647 = vmatpush1.msra.mxu0 0.0
          %648 = vmatprep.subr.mxu0 0.0
          %649 = vmatpush1.msra.mxu0 0.0
          %650 = vmatprep.subr.mxu0 0.0
          %651 = vmatpush1.msra.mxu0 0.0
          %652 = vmatprep.subr.mxu0 0.0
          %653 = vmatpush1.msra.mxu0 0.0
          %654 = vmatprep.subr.mxu0 0.0
          %655 = vmatpush1.msra.mxu0 0.0
          %656 = vmatprep.subr.mxu0 0.0
          %657 = vmatpush1.msra.mxu0 0.0
          %658 = vmatprep.subr.mxu0 0.0
          %659 = vmatpush1.msra.mxu0 0.0
          %660 = vmatprep.subr.mxu0 0.0
          %661 = vmatpush1.msra.mxu0 0.0
          %662 = vmatprep.subr.mxu0 0.0
          %663 = vmatpush1.msra.mxu0 0.0
          %664 = vmatprep.subr.mxu0 0.0
          %665 = vmatpush1.msra.mxu0 0.0
          %666 = vmatprep.subr.mxu0 0.0
          %667 = vmatpush1.msra.mxu0 0.0
          %668 = vmatprep.subr.mxu0 0.0
          %669 = vmatpush1.msra.mxu0 0.0
          %670 = vmatprep.subr.mxu0 0.0
          %671 = vmatpush1.msra.mxu0 0.0
          %672 = vmatprep.subr.mxu0 0.0
          %673 = vmatpush1.msra.mxu0 0.0
          %674 = vmatprep.mubr.f32.mxu0 0.0
          %675 = vmatmul.mubr.f32.gmra.mrb[0].mxu0 %v537
          %v676 = vpop.f32.mrb[0].mxu0
          %v677 = vadd.f32 %v506, %v676
          %v678 = vpop.f32.mrb[0].mxu0
          %v679 = vadd.f32 %v510, %v678
          %680 = vdwg.mxu0
          %681 = vmatprep.subr.mxu0 %v466
          %682 = vmatpush1.msra.mxu0 %v465
          %683 = vmatprep.subr.mxu0 %v474
          %684 = vmatpush1.msra.mxu0 %v473
          %685 = vmatprep.subr.mxu0 %v482
          %686 = vmatpush1.msra.mxu0 %v481
          %687 = vmatprep.subr.mxu0 %v490
          %688 = vmatpush1.msra.mxu0 %v489
          %689 = vmatprep.subr.mxu0 0.0
          %690 = vmatpush1.msra.mxu0 0.0
          %691 = vmatprep.subr.mxu0 0.0
          %692 = vmatpush1.msra.mxu0 0.0
          %693 = vmatprep.subr.mxu0 0.0
          %694 = vmatpush1.msra.mxu0 0.0
          %695 = vmatprep.subr.mxu0 0.0
          %696 = vmatpush1.msra.mxu0 0.0
          %697 = vmatprep.subr.mxu0 0.0
          %698 = vmatpush1.msra.mxu0 0.0
          %699 = vmatprep.subr.mxu0 0.0
          %700 = vmatpush1.msra.mxu0 0.0
          %701 = vmatprep.subr.mxu0 0.0
          %702 = vmatpush1.msra.mxu0 0.0
          %703 = vmatprep.subr.mxu0 0.0
          %704 = vmatpush1.msra.mxu0 0.0
          %705 = vmatprep.subr.mxu0 0.0
          %706 = vmatpush1.msra.mxu0 0.0
          %707 = vmatprep.subr.mxu0 0.0
          %708 = vmatpush1.msra.mxu0 0.0
          %709 = vmatprep.subr.mxu0 0.0
          %710 = vmatpush1.msra.mxu0 0.0
          %711 = vmatprep.subr.mxu0 0.0
          %712 = vmatpush1.msra.mxu0 0.0
          %713 = vmatprep.subr.mxu0 0.0
          %714 = vmatpush1.msra.mxu0 0.0
          %715 = vmatprep.subr.mxu0 0.0
          %716 = vmatpush1.msra.mxu0 0.0
          %717 = vmatprep.subr.mxu0 0.0
          %718 = vmatpush1.msra.mxu0 0.0
          %719 = vmatprep.subr.mxu0 0.0
          %720 = vmatpush1.msra.mxu0 0.0
          %721 = vmatprep.subr.mxu0 0.0
          %722 = vmatpush1.msra.mxu0 0.0
          %723 = vmatprep.subr.mxu0 0.0
          %724 = vmatpush1.msra.mxu0 0.0
          %725 = vmatprep.subr.mxu0 0.0
          %726 = vmatpush1.msra.mxu0 0.0
          %727 = vmatprep.subr.mxu0 0.0
          %728 = vmatpush1.msra.mxu0 0.0
          %729 = vmatprep.subr.mxu0 0.0
          %730 = vmatpush1.msra.mxu0 0.0
          %731 = vmatprep.subr.mxu0 0.0
          %732 = vmatpush1.msra.mxu0 0.0
          %733 = vmatprep.subr.mxu0 0.0
          %734 = vmatpush1.msra.mxu0 0.0
          %735 = vmatprep.subr.mxu0 0.0
          %736 = vmatpush1.msra.mxu0 0.0
          %737 = vmatprep.subr.mxu0 0.0
          %738 = vmatpush1.msra.mxu0 0.0
          %739 = vmatprep.subr.mxu0 0.0
          %740 = vmatpush1.msra.mxu0 0.0
          %741 = vmatprep.subr.mxu0 0.0
          %742 = vmatpush1.msra.mxu0 0.0
          %743 = vmatprep.subr.mxu0 0.0
          %744 = vmatpush1.msra.mxu0 0.0
          %745 = vmatprep.mubr.f32.mxu0 0.0
          %746 = vmatmul.mubr.f32.gmra.mrb[0].mxu0 %v537
          %v747 = vpop.f32.mrb[0].mxu0
          %v748 = vadd.f32 %v514, %v747
          %v749 = vpop.f32.mrb[0].mxu0
          %v750 = vadd.f32 %v518, %v749
          %751 = vdwg.mxu0
          %752 = vmatprep.subr.mxu0 %v468
          %753 = vmatpush1.msra.mxu0 %v467
          %754 = vmatprep.subr.mxu0 %v476
          %755 = vmatpush1.msra.mxu0 %v475
          %756 = vmatprep.subr.mxu0 %v484
          %757 = vmatpush1.msra.mxu0 %v483
          %758 = vmatprep.subr.mxu0 %v492
          %759 = vmatpush1.msra.mxu0 %v491
          %760 = vmatprep.subr.mxu0 0.0
          %761 = vmatpush1.msra.mxu0 0.0
          %762 = vmatprep.subr.mxu0 0.0
          %763 = vmatpush1.msra.mxu0 0.0
          %764 = vmatprep.subr.mxu0 0.0
          %765 = vmatpush1.msra.mxu0 0.0
          %766 = vmatprep.subr.mxu0 0.0
          %767 = vmatpush1.msra.mxu0 0.0
          %768 = vmatprep.subr.mxu0 0.0
          %769 = vmatpush1.msra.mxu0 0.0
          %770 = vmatprep.subr.mxu0 0.0
          %771 = vmatpush1.msra.mxu0 0.0
          %772 = vmatprep.subr.mxu0 0.0
          %773 = vmatpush1.msra.mxu0 0.0
          %774 = vmatprep.subr.mxu0 0.0
          %775 = vmatpush1.msra.mxu0 0.0
          %776 = vmatprep.subr.mxu0 0.0
          %777 = vmatpush1.msra.mxu0 0.0
          %778 = vmatprep.subr.mxu0 0.0
          %779 = vmatpush1.msra.mxu0 0.0
          %780 = vmatprep.subr.mxu0 0.0
          %781 = vmatpush1.msra.mxu0 0.0
          %782 = vmatprep.subr.mxu0 0.0
          %783 = vmatpush1.msra.mxu0 0.0
          %784 = vmatprep.subr.mxu0 0.0
          %785 = vmatpush1.msra.mxu0 0.0
          %786 = vmatprep.subr.mxu0 0.0
          %787 = vmatpush1.msra.mxu0 0.0
          %788 = vmatprep.subr.mxu0 0.0
          %789 = vmatpush1.msra.mxu0 0.0
          %790 = vmatprep.subr.mxu0 0.0
          %791 = vmatpush1.msra.mxu0 0.0
          %792 = vmatprep.subr.mxu0 0.0
          %793 = vmatpush1.msra.mxu0 0.0
          %794 = vmatprep.subr.mxu0 0.0
          %795 = vmatpush1.msra.mxu0 0.0
          %796 = vmatprep.subr.mxu0 0.0
          %797 = vmatpush1.msra.mxu0 0.0
          %798 = vmatprep.subr.mxu0 0.0
          %799 = vmatpush1.msra.mxu0 0.0
          %800 = vmatprep.subr.mxu0 0.0
          %801 = vmatpush1.msra.mxu0 0.0
          %802 = vmatprep.subr.mxu0 0.0
          %803 = vmatpush1.msra.mxu0 0.0
          %804 = vmatprep.subr.mxu0 0.0
          %805 = vmatpush1.msra.mxu0 0.0
          %806 = vmatprep.subr.mxu0 0.0
          %807 = vmatpush1.msra.mxu0 0.0
          %808 = vmatprep.subr.mxu0 0.0
          %809 = vmatpush1.msra.mxu0 0.0
          %810 = vmatprep.subr.mxu0 0.0
          %811 = vmatpush1.msra.mxu0 0.0
          %812 = vmatprep.subr.mxu0 0.0
          %813 = vmatpush1.msra.mxu0 0.0
          %814 = vmatprep.subr.mxu0 0.0
          %815 = vmatpush1.msra.mxu0 0.0
          %816 = vmatprep.mubr.f32.mxu0 0.0
          %817 = vmatmul.mubr.f32.gmra.mrb[0].mxu0 %v537
          %v818 = vpop.f32.mrb[0].mxu0
          %v819 = vadd.f32 %v522, %v818
          %v820 = vpop.f32.mrb[0].mxu0
          %v821 = vadd.f32 %v526, %v820
          %822 = vdwg.mxu0
          %823 = vst [vmem:[#allocation2] sm:$0xff] %v606
          %824 = vst [vmem:[#allocation2 + $0x8] sm:$0xff] %v608
          %825 = vst [vmem:[#allocation2 + $0x10] sm:$0xff] %v677
          %826 = vst [vmem:[#allocation2 + $0x18] sm:$0xff] %v679
          %827 = vst [vmem:[#allocation2 + $0x20] sm:$0xff] %v748
          %828 = vst [vmem:[#allocation2 + $0x28] sm:$0xff] %v750
          %829 = vst [vmem:[#allocation2 + $0x30] sm:$0xff] %v819
          %830 = vst [vmem:[#allocation2 + $0x38] sm:$0xff] %v821
        $region88: #{tpu_custom_call.1} parent=51 // pred_fallthru
          _
        %v831 = vld [vmem:[%s394] sm:$0xff]
        %v832 = vld [vmem:[#allocation8] sm:$0xff]
        %v833 = vld [vmem:[#allocation8 + $0x8] sm:$0xff]
        %v834 = vld [vmem:[#allocation8 + $0x10] sm:$0xff]
        %v835 = vld [vmem:[#allocation8 + $0x18] sm:$0xff]
        %v836 = vld [vmem:[#allocation8 + $0x20] sm:$0xff]
        %v837 = vld [vmem:[#allocation8 + $0x28] sm:$0xff]
        %v838 = vld [vmem:[#allocation8 + $0x30] sm:$0xff]
        %v839 = vld [vmem:[#allocation8 + $0x38] sm:$0xff]
        %v840 = vld [vmem:[#allocation8 + $0x40] sm:$0xff]
        %v841 = vld [vmem:[#allocation8 + $0x48] sm:$0xff]
        %v842 = vld [vmem:[#allocation8 + $0x50] sm:$0xff]
        %v843 = vld [vmem:[#allocation8 + $0x58] sm:$0xff]
        %v844 = vld [vmem:[#allocation8 + $0x60] sm:$0xff]
        %v845 = vld [vmem:[#allocation8 + $0x68] sm:$0xff]
        %v846 = vld [vmem:[#allocation8 + $0x70] sm:$0xff]
        %v847 = vld [vmem:[#allocation8 + $0x78] sm:$0xff]
        %v848 = vld [vmem:[#allocation9] sm:$0xf]
        %v850 = vlaneseq
        %v851 = vshrl.u32 %v850, 7
        %v852 = vsub.s32 0, %v851
        %v853 = vrot.slane %v848, %v852
        %v854 = vlaneseq
        %v855 = vshrl.u32 %v854, 7
        %v856 = vsub.s32 1, %v855
        %v857 = vrot.slane %v848, %v856
        %v858 = vlaneseq
        %v859 = vshrl.u32 %v858, 7
        %v860 = vsub.s32 2, %v859
        %v861 = vrot.slane %v848, %v860
        %v862 = vlaneseq
        %v863 = vshrl.u32 %v862, 7
        %v864 = vsub.s32 3, %v863
        %v865 = vrot.slane %v848, %v864
        %vm870 = vcmask 261120
        %v872 = vsel %vm870, %v831, 0
        %874 = vmatprep.subr.mxu0 %v833
        %875 = vmatpush1.msra.mxu0 %v832
        %876 = vmatprep.subr.mxu0 %v837
        %877 = vmatpush1.msra.mxu0 %v836
        %878 = vmatprep.subr.mxu0 %v841
        %879 = vmatpush1.msra.mxu0 %v840
        %880 = vmatprep.subr.mxu0 %v845
        %881 = vmatpush1.msra.mxu0 %v844
        %882 = vmatprep.subr.mxu0 0.0
        %883 = vmatpush1.msra.mxu0 0.0
        %884 = vmatprep.subr.mxu0 0.0
        %885 = vmatpush1.msra.mxu0 0.0
        %886 = vmatprep.subr.mxu0 0.0
        %887 = vmatpush1.msra.mxu0 0.0
        %888 = vmatprep.subr.mxu0 0.0
        %889 = vmatpush1.msra.mxu0 0.0
        %890 = vmatprep.subr.mxu0 0.0
        %891 = vmatpush1.msra.mxu0 0.0
        %892 = vmatprep.subr.mxu0 0.0
        %893 = vmatpush1.msra.mxu0 0.0
        %894 = vmatprep.subr.mxu0 0.0
        %895 = vmatpush1.msra.mxu0 0.0
        %896 = vmatprep.subr.mxu0 0.0
        %897 = vmatpush1.msra.mxu0 0.0
        %898 = vmatprep.subr.mxu0 0.0
        %899 = vmatpush1.msra.mxu0 0.0
        %900 = vmatprep.subr.mxu0 0.0
        %901 = vmatpush1.msra.mxu0 0.0
        %902 = vmatprep.subr.mxu0 0.0
        %903 = vmatpush1.msra.mxu0 0.0
        %904 = vmatprep.subr.mxu0 0.0
        %905 = vmatpush1.msra.mxu0 0.0
        %906 = vmatprep.subr.mxu0 0.0
        %907 = vmatpush1.msra.mxu0 0.0
        %908 = vmatprep.subr.mxu0 0.0
        %909 = vmatpush1.msra.mxu0 0.0
        %910 = vmatprep.subr.mxu0 0.0
        %911 = vmatpush1.msra.mxu0 0.0
        %912 = vmatprep.subr.mxu0 0.0
        %913 = vmatpush1.msra.mxu0 0.0
        %914 = vmatprep.subr.mxu0 0.0
        %915 = vmatpush1.msra.mxu0 0.0
        %916 = vmatprep.subr.mxu0 0.0
        %917 = vmatpush1.msra.mxu0 0.0
        %918 = vmatprep.subr.mxu0 0.0
        %919 = vmatpush1.msra.mxu0 0.0
        %920 = vmatprep.subr.mxu0 0.0
        %921 = vmatpush1.msra.mxu0 0.0
        %922 = vmatprep.subr.mxu0 0.0
        %923 = vmatpush1.msra.mxu0 0.0
        %924 = vmatprep.subr.mxu0 0.0
        %925 = vmatpush1.msra.mxu0 0.0
        %926 = vmatprep.subr.mxu0 0.0
        %927 = vmatpush1.msra.mxu0 0.0
        %928 = vmatprep.subr.mxu0 0.0
        %929 = vmatpush1.msra.mxu0 0.0
        %930 = vmatprep.subr.mxu0 0.0
        %931 = vmatpush1.msra.mxu0 0.0
        %932 = vmatprep.subr.mxu0 0.0
        %933 = vmatpush1.msra.mxu0 0.0
        %934 = vmatprep.subr.mxu0 0.0
        %935 = vmatpush1.msra.mxu0 0.0
        %936 = vmatprep.subr.mxu0 0.0
        %937 = vmatpush1.msra.mxu0 0.0
        %938 = vmatprep.mubr.f32.mxu0 0.0
        %939 = vmatmul.mubr.f32.gmra.mrb[0].mxu0 %v872
        %v940 = vpop.f32.mrb[0].mxu0
        %v941 = vadd.f32 %v853, %v940
        %v942 = vpop.f32.mrb[0].mxu0
        %v943 = vadd.f32 %v857, %v942
        %944 = vdwg.mxu0
        %945 = vmatprep.subr.mxu0 %v835
        %946 = vmatpush1.msra.mxu0 %v834
        %947 = vmatprep.subr.mxu0 %v839
        %948 = vmatpush1.msra.mxu0 %v838
        %949 = vmatprep.subr.mxu0 %v843
        %950 = vmatpush1.msra.mxu0 %v842
        %951 = vmatprep.subr.mxu0 %v847
        %952 = vmatpush1.msra.mxu0 %v846
        %953 = vmatprep.subr.mxu0 0.0
        %954 = vmatpush1.msra.mxu0 0.0
        %955 = vmatprep.subr.mxu0 0.0
        %956 = vmatpush1.msra.mxu0 0.0
        %957 = vmatprep.subr.mxu0 0.0
        %958 = vmatpush1.msra.mxu0 0.0
        %959 = vmatprep.subr.mxu0 0.0
        %960 = vmatpush1.msra.mxu0 0.0
        %961 = vmatprep.subr.mxu0 0.0
        %962 = vmatpush1.msra.mxu0 0.0
        %963 = vmatprep.subr.mxu0 0.0
        %964 = vmatpush1.msra.mxu0 0.0
        %965 = vmatprep.subr.mxu0 0.0
        %966 = vmatpush1.msra.mxu0 0.0
        %967 = vmatprep.subr.mxu0 0.0
        %968 = vmatpush1.msra.mxu0 0.0
        %969 = vmatprep.subr.mxu0 0.0
        %970 = vmatpush1.msra.mxu0 0.0
        %971 = vmatprep.subr.mxu0 0.0
        %972 = vmatpush1.msra.mxu0 0.0
        %973 = vmatprep.subr.mxu0 0.0
        %974 = vmatpush1.msra.mxu0 0.0
        %975 = vmatprep.subr.mxu0 0.0
        %976 = vmatpush1.msra.mxu0 0.0
        %977 = vmatprep.subr.mxu0 0.0
        %978 = vmatpush1.msra.mxu0 0.0
        %979 = vmatprep.subr.mxu0 0.0
        %980 = vmatpush1.msra.mxu0 0.0
        %981 = vmatprep.subr.mxu0 0.0
        %982 = vmatpush1.msra.mxu0 0.0
        %983 = vmatprep.subr.mxu0 0.0
        %984 = vmatpush1.msra.mxu0 0.0
        %985 = vmatprep.subr.mxu0 0.0
        %986 = vmatpush1.msra.mxu0 0.0
        %987 = vmatprep.subr.mxu0 0.0
        %988 = vmatpush1.msra.mxu0 0.0
        %989 = vmatprep.subr.mxu0 0.0
        %990 = vmatpush1.msra.mxu0 0.0
        %991 = vmatprep.subr.mxu0 0.0
        %992 = vmatpush1.msra.mxu0 0.0
        %993 = vmatprep.subr.mxu0 0.0
        %994 = vmatpush1.msra.mxu0 0.0
        %995 = vmatprep.subr.mxu0 0.0
        %996 = vmatpush1.msra.mxu0 0.0
        %997 = vmatprep.subr.mxu0 0.0
        %998 = vmatpush1.msra.mxu0 0.0
        %999 = vmatprep.subr.mxu0 0.0
        %1000 = vmatpush1.msra.mxu0 0.0
        %1001 = vmatprep.subr.mxu0 0.0
        %1002 = vmatpush1.msra.mxu0 0.0
        %1003 = vmatprep.subr.mxu0 0.0
        %1004 = vmatpush1.msra.mxu0 0.0
        %1005 = vmatprep.subr.mxu0 0.0
        %1006 = vmatpush1.msra.mxu0 0.0
        %1007 = vmatprep.subr.mxu0 0.0
        %1008 = vmatpush1.msra.mxu0 0.0
        %1009 = vmatprep.mubr.f32.mxu0 0.0
        %1010 = vmatmul.mubr.f32.gmra.mrb[0].mxu0 %v872
        %v1011 = vpop.f32.mrb[0].mxu0
        %v1012 = vadd.f32 %v861, %v1011
        %v1013 = vpop.f32.mrb[0].mxu0
        %v1014 = vadd.f32 %v865, %v1013
        %1015 = vdwg.mxu0
        %v1016 = vld [vmem:[#allocation15] sm:$0x1]
        %v1018 = vlaneseq
        %v1019 = vshrl.u32 %v1018, 7
        %v1020 = vsub.s32 0, %v1019
        %v1021 = vrot.slane %v1016, %v1020
        %v1023 = vadd.f32 %v1021, 0.0
        %v1024 = vld [vmem:[#allocation2] sm:$0xff]
        %v1025 = vld [vmem:[#allocation2 + $0x20] sm:$0xff]
        %1026 = vmatprep.subr.mxu0 0.0
        %1027 = vmatpush1.xpose.msra.mxu0 %v1024
        %1028 = vmatprep.subr.mxu0 0.0
        %1029 = vmatpush1.xpose.msra.mxu0 0.0
        %1030 = vmatprep.subr.mxu0 0.0
        %1031 = vmatpush1.xpose.msra.mxu0 0.0
        %1032 = vmatprep.subr.mxu0 0.0
        %1033 = vmatpush1.xpose.msra.mxu0 0.0
        %1034 = vmatprep.subr.mxu0 0.0
        %1035 = vmatpush1.xpose.msra.mxu0 0.0
        %1036 = vmatprep.subr.mxu0 0.0
        %1037 = vmatpush1.xpose.msra.mxu0 0.0
        %1038 = vmatprep.subr.mxu0 0.0
        %1039 = vmatpush1.xpose.msra.mxu0 0.0
        %1040 = vmatprep.subr.mxu0 0.0
        %1041 = vmatpush1.xpose.msra.mxu0 0.0
        %1042 = vmatprep.subr.mxu0 0.0
        %1043 = vmatpush1.xpose.msra.mxu0 0.0
        %1044 = vmatprep.subr.mxu0 0.0
        %1045 = vmatpush1.xpose.msra.mxu0 0.0
        %1046 = vmatprep.subr.mxu0 0.0
        %1047 = vmatpush1.xpose.msra.mxu0 0.0
        %1048 = vmatprep.subr.mxu0 0.0
        %1049 = vmatpush1.xpose.msra.mxu0 0.0
        %1050 = vmatprep.subr.mxu0 0.0
        %1051 = vmatpush1.xpose.msra.mxu0 0.0
        %1052 = vmatprep.subr.mxu0 0.0
        %1053 = vmatpush1.xpose.msra.mxu0 0.0
        %1054 = vmatprep.subr.mxu0 0.0
        %1055 = vmatpush1.xpose.msra.mxu0 0.0
        %1056 = vmatprep.subr.mxu0 0.0
        %1057 = vmatpush1.xpose.msra.mxu0 0.0
        %1058 = vmatprep.subr.mxu0 0.0
        %1059 = vmatpush1.xpose.msra.mxu0 0.0
        %1060 = vmatprep.subr.mxu0 0.0
        %1061 = vmatpush1.xpose.msra.mxu0 0.0
        %1062 = vmatprep.subr.mxu0 0.0
        %1063 = vmatpush1.xpose.msra.mxu0 0.0
        %1064 = vmatprep.subr.mxu0 0.0
        %1065 = vmatpush1.xpose.msra.mxu0 0.0
        %1066 = vmatprep.subr.mxu0 0.0
        %1067 = vmatpush1.xpose.msra.mxu0 0.0
        %1068 = vmatprep.subr.mxu0 0.0
        %1069 = vmatpush1.xpose.msra.mxu0 0.0
        %1070 = vmatprep.subr.mxu0 0.0
        %1071 = vmatpush1.xpose.msra.mxu0 0.0
        %1072 = vmatprep.subr.mxu0 0.0
        %1073 = vmatpush1.xpose.msra.mxu0 0.0
        %1074 = vmatprep.subr.mxu0 0.0
        %1075 = vmatpush1.xpose.msra.mxu0 0.0
        %1076 = vmatprep.subr.mxu0 0.0
        %1077 = vmatpush1.xpose.msra.mxu0 0.0
        %1078 = vmatprep.subr.mxu0 0.0
        %1079 = vmatpush1.xpose.msra.mxu0 0.0
        %1080 = vmatprep.subr.mxu0 0.0
        %1081 = vmatpush1.xpose.msra.mxu0 0.0
        %1082 = vmatprep.subr.mxu0 0.0
        %1083 = vmatpush1.xpose.msra.mxu0 0.0
        %1084 = vmatprep.subr.mxu0 0.0
        %1085 = vmatpush1.xpose.msra.mxu0 0.0
        %1086 = vmatprep.subr.mxu0 0.0
        %1087 = vmatpush1.xpose.msra.mxu0 0.0
        %1088 = vmatprep.subr.mxu0 0.0
        %1089 = vmatpush1.xpose.msra.mxu0 0.0
        %1090 = vmatprep.mubr.f32.mxu0 0.0
        %1091 = vmatmul.mubr.f32.gmra.mrb[0].mxu0 %v941
        %v1092 = vpop.f32.mrb[0].mxu0
        %v1093 = vadd.f32 0.0, %v1092
        %v1094 = vpop.f32.mrb[0].mxu0
        %1095 = vdwg.mxu0
        %vm1096 = vcmask 64512
        %v1097 = vsel %vm1096, %v1093, -inf
        %1098 = vmax.xlane.f32.xlu0 %v1097
        %v1099 = vpop.xlane.xlu0 %1098
        %v1100 = vsub.f32 -inf, %v1099
        %v1101 = vmul.f32 %v1100, 1.442695
        %v1102 = vpow.pop %v1101
        %v1103 = vsub.f32 %v1093, %v1099
        %v1104 = vmul.f32 %v1103, 1.442695
        %v1105 = vpow.pop %v1104
        %v1106 = vmul.f32 %v1102, 0.0
        %v1107 = vsel %vm1096, %v1105, 0.0
        %1108 = vadd.xlane.f32.xlu0 %v1107
        %v1109 = vpop.xlane.xlu0 %1108
        %v1110 = vadd.f32 %v1106, %v1109
        %v1112 = vsel %vm1096, %v1105, 0
        %1114 = vmatprep.subr.mxu0 0.0
        %1115 = vmatpush1.msra.mxu0 %v1025
        %1116 = vmatprep.subr.mxu0 0.0
        %1117 = vmatpush1.msra.mxu0 0.0
        %1118 = vmatprep.subr.mxu0 0.0
        %1119 = vmatpush1.msra.mxu0 0.0
        %1120 = vmatprep.subr.mxu0 0.0
        %1121 = vmatpush1.msra.mxu0 0.0
        %1122 = vmatprep.subr.mxu0 0.0
        %1123 = vmatpush1.msra.mxu0 0.0
        %1124 = vmatprep.subr.mxu0 0.0
        %1125 = vmatpush1.msra.mxu0 0.0
        %1126 = vmatprep.subr.mxu0 0.0
        %1127 = vmatpush1.msra.mxu0 0.0
        %1128 = vmatprep.subr.mxu0 0.0
        %1129 = vmatpush1.msra.mxu0 0.0
        %1130 = vmatprep.subr.mxu0 0.0
        %1131 = vmatpush1.msra.mxu0 0.0
        %1132 = vmatprep.subr.mxu0 0.0
        %1133 = vmatpush1.msra.mxu0 0.0
        %1134 = vmatprep.subr.mxu0 0.0
        %1135 = vmatpush1.msra.mxu0 0.0
        %1136 = vmatprep.subr.mxu0 0.0
        %1137 = vmatpush1.msra.mxu0 0.0
        %1138 = vmatprep.subr.mxu0 0.0
        %1139 = vmatpush1.msra.mxu0 0.0
        %1140 = vmatprep.subr.mxu0 0.0
        %1141 = vmatpush1.msra.mxu0 0.0
        %1142 = vmatprep.subr.mxu0 0.0
        %1143 = vmatpush1.msra.mxu0 0.0
        %1144 = vmatprep.subr.mxu0 0.0
        %1145 = vmatpush1.msra.mxu0 0.0
        %1146 = vmatprep.subr.mxu0 0.0
        %1147 = vmatpush1.msra.mxu0 0.0
        %1148 = vmatprep.subr.mxu0 0.0
        %1149 = vmatpush1.msra.mxu0 0.0
        %1150 = vmatprep.subr.mxu0 0.0
        %1151 = vmatpush1.msra.mxu0 0.0
        %1152 = vmatprep.subr.mxu0 0.0
        %1153 = vmatpush1.msra.mxu0 0.0
        %1154 = vmatprep.subr.mxu0 0.0
        %1155 = vmatpush1.msra.mxu0 0.0
        %1156 = vmatprep.subr.mxu0 0.0
        %1157 = vmatpush1.msra.mxu0 0.0
        %1158 = vmatprep.subr.mxu0 0.0
        %1159 = vmatpush1.msra.mxu0 0.0
        %1160 = vmatprep.subr.mxu0 0.0
        %1161 = vmatpush1.msra.mxu0 0.0
        %1162 = vmatprep.subr.mxu0 0.0
        %1163 = vmatpush1.msra.mxu0 0.0
        %1164 = vmatprep.subr.mxu0 0.0
        %1165 = vmatpush1.msra.mxu0 0.0
        %1166 = vmatprep.subr.mxu0 0.0
        %1167 = vmatpush1.msra.mxu0 0.0
        %1168 = vmatprep.subr.mxu0 0.0
        %1169 = vmatpush1.msra.mxu0 0.0
        %1170 = vmatprep.subr.mxu0 0.0
        %1171 = vmatpush1.msra.mxu0 0.0
        %1172 = vmatprep.subr.mxu0 0.0
        %1173 = vmatpush1.msra.mxu0 0.0
        %1174 = vmatprep.subr.mxu0 0.0
        %1175 = vmatpush1.msra.mxu0 0.0
        %1176 = vmatprep.subr.mxu0 0.0
        %1177 = vmatpush1.msra.mxu0 0.0
        %1178 = vmatprep.mubr.f32.mxu0 0.0
        %1179 = vmatmul.mubr.f32.gmra.mrb[0].mxu0 %v1112
        %v1180 = vpop.f32.mrb[0].mxu0
        %v1181 = vadd.f32 0.0, %v1180
        %v1182 = vpop.f32.mrb[0].mxu0
        %1183 = vdwg.mxu0
        %v1184 = vadd.f32 %v1106, %v1181
        %v1185 = vrcp.pop %v1110
        %v1186 = vmul.f32 1.0, %v1185
        %v1187 = vmul.f32 %v1184, %v1186
        %v1188 = vld [vmem:[#allocation14] sm:$0xff]
        %v1189 = vld [vmem:[#allocation14 + $0x8] sm:$0xff]
        %v1190 = vld [vmem:[#allocation14 + $0x10] sm:$0xff]
        %v1191 = vld [vmem:[#allocation14 + $0x18] sm:$0xff]
        %v1192 = vld [vmem:[#allocation14 + $0x20] sm:$0xff]
        %v1193 = vld [vmem:[#allocation14 + $0x28] sm:$0xff]
        %v1194 = vld [vmem:[#allocation14 + $0x30] sm:$0xff]
        %v1195 = vld [vmem:[#allocation14 + $0x38] sm:$0xff]
        %v1196 = vld [vmem:[#allocation14 + $0x40] sm:$0xff]
        %v1197 = vld [vmem:[#allocation14 + $0x48] sm:$0xff]
        %v1198 = vld [vmem:[#allocation14 + $0x50] sm:$0xff]
        %v1199 = vld [vmem:[#allocation14 + $0x58] sm:$0xff]
        %v1200 = vld [vmem:[#allocation14 + $0x60] sm:$0xff]
        %v1201 = vld [vmem:[#allocation14 + $0x68] sm:$0xff]
        %v1202 = vld [vmem:[#allocation14 + $0x70] sm:$0xff]
        %v1203 = vld [vmem:[#allocation14 + $0x78] sm:$0xff]
        %1204 = vmatprep.subr.mxu0 0.0
        %1205 = vmatpush1.msra.mxu0 %v1188
        %1206 = vmatprep.subr.mxu0 0.0
        %1207 = vmatpush1.msra.mxu0 %v1189
        %1208 = vmatprep.subr.mxu0 0.0
        %1209 = vmatpush1.msra.mxu0 %v1190
        %1210 = vmatprep.subr.mxu0 0.0
        %1211 = vmatpush1.msra.mxu0 %v1191
        %1212 = vmatprep.subr.mxu0 0.0
        %1213 = vmatpush1.msra.mxu0 %v1192
        %1214 = vmatprep.subr.mxu0 0.0
        %1215 = vmatpush1.msra.mxu0 %v1193
        %1216 = vmatprep.subr.mxu0 0.0
        %1217 = vmatpush1.msra.mxu0 %v1194
        %1218 = vmatprep.subr.mxu0 0.0
        %1219 = vmatpush1.msra.mxu0 %v1195
        %1220 = vmatprep.subr.mxu0 0.0
        %1221 = vmatpush1.msra.mxu0 %v1196
        %1222 = vmatprep.subr.mxu0 0.0
        %1223 = vmatpush1.msra.mxu0 %v1197
        %1224 = vmatprep.subr.mxu0 0.0
        %1225 = vmatpush1.msra.mxu0 %v1198
        %1226 = vmatprep.subr.mxu0 0.0
        %1227 = vmatpush1.msra.mxu0 %v1199
        %1228 = vmatprep.subr.mxu0 0.0
        %1229 = vmatpush1.msra.mxu0 %v1200
        %1230 = vmatprep.subr.mxu0 0.0
        %1231 = vmatpush1.msra.mxu0 %v1201
        %1232 = vmatprep.subr.mxu0 0.0
        %1233 = vmatpush1.msra.mxu0 %v1202
        %1234 = vmatprep.subr.mxu0 0.0
        %1235 = vmatpush1.msra.mxu0 %v1203
        %1236 = vmatprep.subr.mxu0 0.0
        %1237 = vmatpush1.msra.mxu0 0.0
        %1238 = vmatprep.subr.mxu0 0.0
        %1239 = vmatpush1.msra.mxu0 0.0
        %1240 = vmatprep.subr.mxu0 0.0
        %1241 = vmatpush1.msra.mxu0 0.0
        %1242 = vmatprep.subr.mxu0 0.0
        %1243 = vmatpush1.msra.mxu0 0.0
        %1244 = vmatprep.subr.mxu0 0.0
        %1245 = vmatpush1.msra.mxu0 0.0
        %1246 = vmatprep.subr.mxu0 0.0
        %1247 = vmatpush1.msra.mxu0 0.0
        %1248 = vmatprep.subr.mxu0 0.0
        %1249 = vmatpush1.msra.mxu0 0.0
        %1250 = vmatprep.subr.mxu0 0.0
        %1251 = vmatpush1.msra.mxu0 0.0
        %1252 = vmatprep.subr.mxu0 0.0
        %1253 = vmatpush1.msra.mxu0 0.0
        %1254 = vmatprep.subr.mxu0 0.0
        %1255 = vmatpush1.msra.mxu0 0.0
        %1256 = vmatprep.subr.mxu0 0.0
        %1257 = vmatpush1.msra.mxu0 0.0
        %1258 = vmatprep.subr.mxu0 0.0
        %1259 = vmatpush1.msra.mxu0 0.0
        %1260 = vmatprep.subr.mxu0 0.0
        %1261 = vmatpush1.msra.mxu0 0.0
        %1262 = vmatprep.subr.mxu0 0.0
        %1263 = vmatpush1.msra.mxu0 0.0
        %1264 = vmatprep.subr.mxu0 0.0
        %1265 = vmatpush1.msra.mxu0 0.0
        %1266 = vmatprep.subr.mxu0 0.0
        %1267 = vmatpush1.msra.mxu0 0.0
        %1268 = vmatprep.mubr.f32.mxu0 0.0
        %1269 = vmatmul.mubr.f32.gmra.mrb[0].mxu0 %v1187
        %v1270 = vpop.f32.mrb[0].mxu0
        %v1271 = vadd.f32 0.0, %v1270
        %v1272 = vpop.f32.mrb[0].mxu0
        %1273 = vdwg.mxu0
        %v1274 = vadd.f32 %v1023, %v1271
        %v1275 = vld [vmem:[#allocation2 + $0x8] sm:$0xff]
        %v1276 = vld [vmem:[#allocation2 + $0x28] sm:$0xff]
        %1277 = vmatprep.subr.mxu0 0.0
        %1278 = vmatpush1.xpose.msra.mxu0 %v1275
        %1279 = vmatprep.subr.mxu0 0.0
        %1280 = vmatpush1.xpose.msra.mxu0 0.0
        %1281 = vmatprep.subr.mxu0 0.0
        %1282 = vmatpush1.xpose.msra.mxu0 0.0
        %1283 = vmatprep.subr.mxu0 0.0
        %1284 = vmatpush1.xpose.msra.mxu0 0.0
        %1285 = vmatprep.subr.mxu0 0.0
        %1286 = vmatpush1.xpose.msra.mxu0 0.0
        %1287 = vmatprep.subr.mxu0 0.0
        %1288 = vmatpush1.xpose.msra.mxu0 0.0
        %1289 = vmatprep.subr.mxu0 0.0
        %1290 = vmatpush1.xpose.msra.mxu0 0.0
        %1291 = vmatprep.subr.mxu0 0.0
        %1292 = vmatpush1.xpose.msra.mxu0 0.0
        %1293 = vmatprep.subr.mxu0 0.0
        %1294 = vmatpush1.xpose.msra.mxu0 0.0
        %1295 = vmatprep.subr.mxu0 0.0
        %1296 = vmatpush1.xpose.msra.mxu0 0.0
        %1297 = vmatprep.subr.mxu0 0.0
        %1298 = vmatpush1.xpose.msra.mxu0 0.0
        %1299 = vmatprep.subr.mxu0 0.0
        %1300 = vmatpush1.xpose.msra.mxu0 0.0
        %1301 = vmatprep.subr.mxu0 0.0
        %1302 = vmatpush1.xpose.msra.mxu0 0.0
        %1303 = vmatprep.subr.mxu0 0.0
        %1304 = vmatpush1.xpose.msra.mxu0 0.0
        %1305 = vmatprep.subr.mxu0 0.0
        %1306 = vmatpush1.xpose.msra.mxu0 0.0
        %1307 = vmatprep.subr.mxu0 0.0
        %1308 = vmatpush1.xpose.msra.mxu0 0.0
        %1309 = vmatprep.subr.mxu0 0.0
        %1310 = vmatpush1.xpose.msra.mxu0 0.0
        %1311 = vmatprep.subr.mxu0 0.0
        %1312 = vmatpush1.xpose.msra.mxu0 0.0
        %1313 = vmatprep.subr.mxu0 0.0
        %1314 = vmatpush1.xpose.msra.mxu0 0.0
        %1315 = vmatprep.subr.mxu0 0.0
        %1316 = vmatpush1.xpose.msra.mxu0 0.0
        %1317 = vmatprep.subr.mxu0 0.0
        %1318 = vmatpush1.xpose.msra.mxu0 0.0
        %1319 = vmatprep.subr.mxu0 0.0
        %1320 = vmatpush1.xpose.msra.mxu0 0.0
        %1321 = vmatprep.subr.mxu0 0.0
        %1322 = vmatpush1.xpose.msra.mxu0 0.0
        %1323 = vmatprep.subr.mxu0 0.0
        %1324 = vmatpush1.xpose.msra.mxu0 0.0
        %1325 = vmatprep.subr.mxu0 0.0
        %1326 = vmatpush1.xpose.msra.mxu0 0.0
        %1327 = vmatprep.subr.mxu0 0.0
        %1328 = vmatpush1.xpose.msra.mxu0 0.0
        %1329 = vmatprep.subr.mxu0 0.0
        %1330 = vmatpush1.xpose.msra.mxu0 0.0
        %1331 = vmatprep.subr.mxu0 0.0
        %1332 = vmatpush1.xpose.msra.mxu0 0.0
        %1333 = vmatprep.subr.mxu0 0.0
        %1334 = vmatpush1.xpose.msra.mxu0 0.0
        %1335 = vmatprep.subr.mxu0 0.0
        %1336 = vmatpush1.xpose.msra.mxu0 0.0
        %1337 = vmatprep.subr.mxu0 0.0
        %1338 = vmatpush1.xpose.msra.mxu0 0.0
        %1339 = vmatprep.subr.mxu0 0.0
        %1340 = vmatpush1.xpose.msra.mxu0 0.0
        %1341 = vmatprep.mubr.f32.mxu0 0.0
        %1342 = vmatmul.mubr.f32.gmra.mrb[0].mxu0 %v943
        %v1343 = vpop.f32.mrb[0].mxu0
        %v1344 = vadd.f32 0.0, %v1343
        %v1345 = vpop.f32.mrb[0].mxu0
        %1346 = vdwg.mxu0
        %v1347 = vsel %vm1096, %v1344, -inf
        %1348 = vmax.xlane.f32.xlu0 %v1347
        %v1349 = vpop.xlane.xlu0 %1348
        %v1350 = vsub.f32 -inf, %v1349
        %v1351 = vmul.f32 %v1350, 1.442695
        %v1352 = vpow.pop %v1351
        %v1353 = vsub.f32 %v1344, %v1349
        %v1354 = vmul.f32 %v1353, 1.442695
        %v1355 = vpow.pop %v1354
        %v1356 = vmul.f32 %v1352, 0.0
        %v1357 = vsel %vm1096, %v1355, 0.0
        %1358 = vadd.xlane.f32.xlu0 %v1357
        %v1359 = vpop.xlane.xlu0 %1358
        %v1360 = vadd.f32 %v1356, %v1359
        %v1362 = vsel %vm1096, %v1355, 0
        %1364 = vmatprep.subr.mxu0 0.0
        %1365 = vmatpush1.msra.mxu0 %v1276
        %1366 = vmatprep.subr.mxu0 0.0
        %1367 = vmatpush1.msra.mxu0 0.0
        %1368 = vmatprep.subr.mxu0 0.0
        %1369 = vmatpush1.msra.mxu0 0.0
        %1370 = vmatprep.subr.mxu0 0.0
        %1371 = vmatpush1.msra.mxu0 0.0
        %1372 = vmatprep.subr.mxu0 0.0
        %1373 = vmatpush1.msra.mxu0 0.0
        %1374 = vmatprep.subr.mxu0 0.0
        %1375 = vmatpush1.msra.mxu0 0.0
        %1376 = vmatprep.subr.mxu0 0.0
        %1377 = vmatpush1.msra.mxu0 0.0
        %1378 = vmatprep.subr.mxu0 0.0
        %1379 = vmatpush1.msra.mxu0 0.0
        %1380 = vmatprep.subr.mxu0 0.0
        %1381 = vmatpush1.msra.mxu0 0.0
        %1382 = vmatprep.subr.mxu0 0.0
        %1383 = vmatpush1.msra.mxu0 0.0
        %1384 = vmatprep.subr.mxu0 0.0
        %1385 = vmatpush1.msra.mxu0 0.0
        %1386 = vmatprep.subr.mxu0 0.0
        %1387 = vmatpush1.msra.mxu0 0.0
        %1388 = vmatprep.subr.mxu0 0.0
        %1389 = vmatpush1.msra.mxu0 0.0
        %1390 = vmatprep.subr.mxu0 0.0
        %1391 = vmatpush1.msra.mxu0 0.0
        %1392 = vmatprep.subr.mxu0 0.0
        %1393 = vmatpush1.msra.mxu0 0.0
        %1394 = vmatprep.subr.mxu0 0.0
        %1395 = vmatpush1.msra.mxu0 0.0
        %1396 = vmatprep.subr.mxu0 0.0
        %1397 = vmatpush1.msra.mxu0 0.0
        %1398 = vmatprep.subr.mxu0 0.0
        %1399 = vmatpush1.msra.mxu0 0.0
        %1400 = vmatprep.subr.mxu0 0.0
        %1401 = vmatpush1.msra.mxu0 0.0
        %1402 = vmatprep.subr.mxu0 0.0
        %1403 = vmatpush1.msra.mxu0 0.0
        %1404 = vmatprep.subr.mxu0 0.0
        %1405 = vmatpush1.msra.mxu0 0.0
        %1406 = vmatprep.subr.mxu0 0.0
        %1407 = vmatpush1.msra.mxu0 0.0
        %1408 = vmatprep.subr.mxu0 0.0
        %1409 = vmatpush1.msra.mxu0 0.0
        %1410 = vmatprep.subr.mxu0 0.0
        %1411 = vmatpush1.msra.mxu0 0.0
        %1412 = vmatprep.subr.mxu0 0.0
        %1413 = vmatpush1.msra.mxu0 0.0
        %1414 = vmatprep.subr.mxu0 0.0
        %1415 = vmatpush1.msra.mxu0 0.0
        %1416 = vmatprep.subr.mxu0 0.0
        %1417 = vmatpush1.msra.mxu0 0.0
        %1418 = vmatprep.subr.mxu0 0.0
        %1419 = vmatpush1.msra.mxu0 0.0
        %1420 = vmatprep.subr.mxu0 0.0
        %1421 = vmatpush1.msra.mxu0 0.0
        %1422 = vmatprep.subr.mxu0 0.0
        %1423 = vmatpush1.msra.mxu0 0.0
        %1424 = vmatprep.subr.mxu0 0.0
        %1425 = vmatpush1.msra.mxu0 0.0
        %1426 = vmatprep.subr.mxu0 0.0
        %1427 = vmatpush1.msra.mxu0 0.0
        %1428 = vmatprep.mubr.f32.mxu0 0.0
        %1429 = vmatmul.mubr.f32.gmra.mrb[0].mxu0 %v1362
        %v1430 = vpop.f32.mrb[0].mxu0
        %v1431 = vadd.f32 0.0, %v1430
        %v1432 = vpop.f32.mrb[0].mxu0
        %1433 = vdwg.mxu0
        %v1434 = vadd.f32 %v1356, %v1431
        %v1435 = vrcp.pop %v1360
        %v1436 = vmul.f32 1.0, %v1435
        %v1437 = vmul.f32 %v1434, %v1436
        %v1438 = vld [vmem:[#allocation14 + $0x80] sm:$0xff]
        %v1439 = vld [vmem:[#allocation14 + $0x88] sm:$0xff]
        %v1440 = vld [vmem:[#allocation14 + $0x90] sm:$0xff]
        %v1441 = vld [vmem:[#allocation14 + $0x98] sm:$0xff]
        %v1442 = vld [vmem:[#allocation14 + $0xa0] sm:$0xff]
        %v1443 = vld [vmem:[#allocation14 + $0xa8] sm:$0xff]
        %v1444 = vld [vmem:[#allocation14 + $0xb0] sm:$0xff]
        %v1445 = vld [vmem:[#allocation14 + $0xb8] sm:$0xff]
        %v1446 = vld [vmem:[#allocation14 + $0xc0] sm:$0xff]
        %v1447 = vld [vmem:[#allocation14 + $0xc8] sm:$0xff]
        %v1448 = vld [vmem:[#allocation14 + $0xd0] sm:$0xff]
        %v1449 = vld [vmem:[#allocation14 + $0xd8] sm:$0xff]
        %v1450 = vld [vmem:[#allocation14 + $0xe0] sm:$0xff]
        %v1451 = vld [vmem:[#allocation14 + $0xe8] sm:$0xff]
        %v1452 = vld [vmem:[#allocation14 + $0xf0] sm:$0xff]
        %v1453 = vld [vmem:[#allocation14 + $0xf8] sm:$0xff]
        %1454 = vmatprep.subr.mxu0 0.0
        %1455 = vmatpush1.msra.mxu0 %v1438
        %1456 = vmatprep.subr.mxu0 0.0
        %1457 = vmatpush1.msra.mxu0 %v1439
        %1458 = vmatprep.subr.mxu0 0.0
        %1459 = vmatpush1.msra.mxu0 %v1440
        %1460 = vmatprep.subr.mxu0 0.0
        %1461 = vmatpush1.msra.mxu0 %v1441
        %1462 = vmatprep.subr.mxu0 0.0
        %1463 = vmatpush1.msra.mxu0 %v1442
        %1464 = vmatprep.subr.mxu0 0.0
        %1465 = vmatpush1.msra.mxu0 %v1443
        %1466 = vmatprep.subr.mxu0 0.0
        %1467 = vmatpush1.msra.mxu0 %v1444
        %1468 = vmatprep.subr.mxu0 0.0
        %1469 = vmatpush1.msra.mxu0 %v1445
        %1470 = vmatprep.subr.mxu0 0.0
        %1471 = vmatpush1.msra.mxu0 %v1446
        %1472 = vmatprep.subr.mxu0 0.0
        %1473 = vmatpush1.msra.mxu0 %v1447
        %1474 = vmatprep.subr.mxu0 0.0
        %1475 = vmatpush1.msra.mxu0 %v1448
        %1476 = vmatprep.subr.mxu0 0.0
        %1477 = vmatpush1.msra.mxu0 %v1449
        %1478 = vmatprep.subr.mxu0 0.0
        %1479 = vmatpush1.msra.mxu0 %v1450
        %1480 = vmatprep.subr.mxu0 0.0
        %1481 = vmatpush1.msra.mxu0 %v1451
        %1482 = vmatprep.subr.mxu0 0.0
        %1483 = vmatpush1.msra.mxu0 %v1452
        %1484 = vmatprep.subr.mxu0 0.0
        %1485 = vmatpush1.msra.mxu0 %v1453
        %1486 = vmatprep.subr.mxu0 0.0
        %1487 = vmatpush1.msra.mxu0 0.0
        %1488 = vmatprep.subr.mxu0 0.0
        %1489 = vmatpush1.msra.mxu0 0.0
        %1490 = vmatprep.subr.mxu0 0.0
        %1491 = vmatpush1.msra.mxu0 0.0
        %1492 = vmatprep.subr.mxu0 0.0
        %1493 = vmatpush1.msra.mxu0 0.0
        %1494 = vmatprep.subr.mxu0 0.0
        %1495 = vmatpush1.msra.mxu0 0.0
        %1496 = vmatprep.subr.mxu0 0.0
        %1497 = vmatpush1.msra.mxu0 0.0
        %1498 = vmatprep.subr.mxu0 0.0
        %1499 = vmatpush1.msra.mxu0 0.0
        %1500 = vmatprep.subr.mxu0 0.0
        %1501 = vmatpush1.msra.mxu0 0.0
        %1502 = vmatprep.subr.mxu0 0.0
        %1503 = vmatpush1.msra.mxu0 0.0
        %1504 = vmatprep.subr.mxu0 0.0
        %1505 = vmatpush1.msra.mxu0 0.0
        %1506 = vmatprep.subr.mxu0 0.0
        %1507 = vmatpush1.msra.mxu0 0.0
        %1508 = vmatprep.subr.mxu0 0.0
        %1509 = vmatpush1.msra.mxu0 0.0
        %1510 = vmatprep.subr.mxu0 0.0
        %1511 = vmatpush1.msra.mxu0 0.0
        %1512 = vmatprep.subr.mxu0 0.0
        %1513 = vmatpush1.msra.mxu0 0.0
        %1514 = vmatprep.subr.mxu0 0.0
        %1515 = vmatpush1.msra.mxu0 0.0
        %1516 = vmatprep.subr.mxu0 0.0
        %1517 = vmatpush1.msra.mxu0 0.0
        %1518 = vmatprep.mubr.f32.mxu0 0.0
        %1519 = vmatmul.mubr.f32.gmra.mrb[0].mxu0 %v1437
        %v1520 = vpop.f32.mrb[0].mxu0
        %v1521 = vadd.f32 0.0, %v1520
        %v1522 = vpop.f32.mrb[0].mxu0
        %1523 = vdwg.mxu0
        %v1524 = vadd.f32 %v1274, %v1521
        %v1525 = vld [vmem:[#allocation2 + $0x10] sm:$0xff]
        %v1526 = vld [vmem:[#allocation2 + $0x30] sm:$0xff]
        %1527 = vmatprep.subr.mxu0 0.0
        %1528 = vmatpush1.xpose.msra.mxu0 %v1525
        %1529 = vmatprep.subr.mxu0 0.0
        %1530 = vmatpush1.xpose.msra.mxu0 0.0
        %1531 = vmatprep.subr.mxu0 0.0
        %1532 = vmatpush1.xpose.msra.mxu0 0.0
        %1533 = vmatprep.subr.mxu0 0.0
        %1534 = vmatpush1.xpose.msra.mxu0 0.0
        %1535 = vmatprep.subr.mxu0 0.0
        %1536 = vmatpush1.xpose.msra.mxu0 0.0
        %1537 = vmatprep.subr.mxu0 0.0
        %1538 = vmatpush1.xpose.msra.mxu0 0.0
        %1539 = vmatprep.subr.mxu0 0.0
        %1540 = vmatpush1.xpose.msra.mxu0 0.0
        %1541 = vmatprep.subr.mxu0 0.0
        %1542 = vmatpush1.xpose.msra.mxu0 0.0
        %1543 = vmatprep.subr.mxu0 0.0
        %1544 = vmatpush1.xpose.msra.mxu0 0.0
        %1545 = vmatprep.subr.mxu0 0.0
        %1546 = vmatpush1.xpose.msra.mxu0 0.0
        %1547 = vmatprep.subr.mxu0 0.0
        %1548 = vmatpush1.xpose.msra.mxu0 0.0
        %1549 = vmatprep.subr.mxu0 0.0
        %1550 = vmatpush1.xpose.msra.mxu0 0.0
        %1551 = vmatprep.subr.mxu0 0.0
        %1552 = vmatpush1.xpose.msra.mxu0 0.0
        %1553 = vmatprep.subr.mxu0 0.0
        %1554 = vmatpush1.xpose.msra.mxu0 0.0
        %1555 = vmatprep.subr.mxu0 0.0
        %1556 = vmatpush1.xpose.msra.mxu0 0.0
        %1557 = vmatprep.subr.mxu0 0.0
        %1558 = vmatpush1.xpose.msra.mxu0 0.0
        %1559 = vmatprep.subr.mxu0 0.0
        %1560 = vmatpush1.xpose.msra.mxu0 0.0
        %1561 = vmatprep.subr.mxu0 0.0
        %1562 = vmatpush1.xpose.msra.mxu0 0.0
        %1563 = vmatprep.subr.mxu0 0.0
        %1564 = vmatpush1.xpose.msra.mxu0 0.0
        %1565 = vmatprep.subr.mxu0 0.0
        %1566 = vmatpush1.xpose.msra.mxu0 0.0
        %1567 = vmatprep.subr.mxu0 0.0
        %1568 = vmatpush1.xpose.msra.mxu0 0.0
        %1569 = vmatprep.subr.mxu0 0.0
        %1570 = vmatpush1.xpose.msra.mxu0 0.0
        %1571 = vmatprep.subr.mxu0 0.0
        %1572 = vmatpush1.xpose.msra.mxu0 0.0
        %1573 = vmatprep.subr.mxu0 0.0
        %1574 = vmatpush1.xpose.msra.mxu0 0.0
        %1575 = vmatprep.subr.mxu0 0.0
        %1576 = vmatpush1.xpose.msra.mxu0 0.0
        %1577 = vmatprep.subr.mxu0 0.0
        %1578 = vmatpush1.xpose.msra.mxu0 0.0
        %1579 = vmatprep.subr.mxu0 0.0
        %1580 = vmatpush1.xpose.msra.mxu0 0.0
        %1581 = vmatprep.subr.mxu0 0.0
        %1582 = vmatpush1.xpose.msra.mxu0 0.0
        %1583 = vmatprep.subr.mxu0 0.0
        %1584 = vmatpush1.xpose.msra.mxu0 0.0
        %1585 = vmatprep.subr.mxu0 0.0
        %1586 = vmatpush1.xpose.msra.mxu0 0.0
        %1587 = vmatprep.subr.mxu0 0.0
        %1588 = vmatpush1.xpose.msra.mxu0 0.0
        %1589 = vmatprep.subr.mxu0 0.0
        %1590 = vmatpush1.xpose.msra.mxu0 0.0
        %1591 = vmatprep.mubr.f32.mxu0 0.0
        %1592 = vmatmul.mubr.f32.gmra.mrb[0].mxu0 %v1012
        %v1593 = vpop.f32.mrb[0].mxu0
        %v1594 = vadd.f32 0.0, %v1593
        %v1595 = vpop.f32.mrb[0].mxu0
        %1596 = vdwg.mxu0
        %v1597 = vsel %vm1096, %v1594, -inf
        %1598 = vmax.xlane.f32.xlu0 %v1597
        %v1599 = vpop.xlane.xlu0 %1598
        %v1600 = vsub.f32 -inf, %v1599
        %v1601 = vmul.f32 %v1600, 1.442695
        %v1602 = vpow.pop %v1601
        %v1603 = vsub.f32 %v1594, %v1599
        %v1604 = vmul.f32 %v1603, 1.442695
        %v1605 = vpow.pop %v1604
        %v1606 = vmul.f32 %v1602, 0.0
        %v1607 = vsel %vm1096, %v1605, 0.0
        %1608 = vadd.xlane.f32.xlu0 %v1607
        %v1609 = vpop.xlane.xlu0 %1608
        %v1610 = vadd.f32 %v1606, %v1609
        %v1612 = vsel %vm1096, %v1605, 0
        %1614 = vmatprep.subr.mxu0 0.0
        %1615 = vmatpush1.msra.mxu0 %v1526
        %1616 = vmatprep.subr.mxu0 0.0
        %1617 = vmatpush1.msra.mxu0 0.0
        %1618 = vmatprep.subr.mxu0 0.0
        %1619 = vmatpush1.msra.mxu0 0.0
        %1620 = vmatprep.subr.mxu0 0.0
        %1621 = vmatpush1.msra.mxu0 0.0
        %1622 = vmatprep.subr.mxu0 0.0
        %1623 = vmatpush1.msra.mxu0 0.0
        %1624 = vmatprep.subr.mxu0 0.0
        %1625 = vmatpush1.msra.mxu0 0.0
        %1626 = vmatprep.subr.mxu0 0.0
        %1627 = vmatpush1.msra.mxu0 0.0
        %1628 = vmatprep.subr.mxu0 0.0
        %1629 = vmatpush1.msra.mxu0 0.0
        %1630 = vmatprep.subr.mxu0 0.0
        %1631 = vmatpush1.msra.mxu0 0.0
        %1632 = vmatprep.subr.mxu0 0.0
        %1633 = vmatpush1.msra.mxu0 0.0
        %1634 = vmatprep.subr.mxu0 0.0
        %1635 = vmatpush1.msra.mxu0 0.0
        %1636 = vmatprep.subr.mxu0 0.0
        %1637 = vmatpush1.msra.mxu0 0.0
        %1638 = vmatprep.subr.mxu0 0.0
        %1639 = vmatpush1.msra.mxu0 0.0
        %1640 = vmatprep.subr.mxu0 0.0
        %1641 = vmatpush1.msra.mxu0 0.0
        %1642 = vmatprep.subr.mxu0 0.0
        %1643 = vmatpush1.msra.mxu0 0.0
        %1644 = vmatprep.subr.mxu0 0.0
        %1645 = vmatpush1.msra.mxu0 0.0
        %1646 = vmatprep.subr.mxu0 0.0
        %1647 = vmatpush1.msra.mxu0 0.0
        %1648 = vmatprep.subr.mxu0 0.0
        %1649 = vmatpush1.msra.mxu0 0.0
        %1650 = vmatprep.subr.mxu0 0.0
        %1651 = vmatpush1.msra.mxu0 0.0
        %1652 = vmatprep.subr.mxu0 0.0
        %1653 = vmatpush1.msra.mxu0 0.0
        %1654 = vmatprep.subr.mxu0 0.0
        %1655 = vmatpush1.msra.mxu0 0.0
        %1656 = vmatprep.subr.mxu0 0.0
        %1657 = vmatpush1.msra.mxu0 0.0
        %1658 = vmatprep.subr.mxu0 0.0
        %1659 = vmatpush1.msra.mxu0 0.0
        %1660 = vmatprep.subr.mxu0 0.0
        %1661 = vmatpush1.msra.mxu0 0.0
        %1662 = vmatprep.subr.mxu0 0.0
        %1663 = vmatpush1.msra.mxu0 0.0
        %1664 = vmatprep.subr.mxu0 0.0
        %1665 = vmatpush1.msra.mxu0 0.0
        %1666 = vmatprep.subr.mxu0 0.0
        %1667 = vmatpush1.msra.mxu0 0.0
        %1668 = vmatprep.subr.mxu0 0.0
        %1669 = vmatpush1.msra.mxu0 0.0
        %1670 = vmatprep.subr.mxu0 0.0
        %1671 = vmatpush1.msra.mxu0 0.0
        %1672 = vmatprep.subr.mxu0 0.0
        %1673 = vmatpush1.msra.mxu0 0.0
        %1674 = vmatprep.subr.mxu0 0.0
        %1675 = vmatpush1.msra.mxu0 0.0
        %1676 = vmatprep.subr.mxu0 0.0
        %1677 = vmatpush1.msra.mxu0 0.0
        %1678 = vmatprep.mubr.f32.mxu0 0.0
        %1679 = vmatmul.mubr.f32.gmra.mrb[0].mxu0 %v1612
        %v1680 = vpop.f32.mrb[0].mxu0
        %v1681 = vadd.f32 0.0, %v1680
        %v1682 = vpop.f32.mrb[0].mxu0
        %1683 = vdwg.mxu0
        %v1684 = vadd.f32 %v1606, %v1681
        %v1685 = vrcp.pop %v1610
        %v1686 = vmul.f32 1.0, %v1685
        %v1687 = vmul.f32 %v1684, %v1686
        %v1688 = vld [vmem:[#allocation14 + $0x100] sm:$0xff]
        %v1689 = vld [vmem:[#allocation14 + $0x108] sm:$0xff]
        %v1690 = vld [vmem:[#allocation14 + $0x110] sm:$0xff]
        %v1691 = vld [vmem:[#allocation14 + $0x118] sm:$0xff]
        %v1692 = vld [vmem:[#allocation14 + $0x120] sm:$0xff]
        %v1693 = vld [vmem:[#allocation14 + $0x128] sm:$0xff]
        %v1694 = vld [vmem:[#allocation14 + $0x130] sm:$0xff]
        %v1695 = vld [vmem:[#allocation14 + $0x138] sm:$0xff]
        %v1696 = vld [vmem:[#allocation14 + $0x140] sm:$0xff]
        %v1697 = vld [vmem:[#allocation14 + $0x148] sm:$0xff]
        %v1698 = vld [vmem:[#allocation14 + $0x150] sm:$0xff]
        %v1699 = vld [vmem:[#allocation14 + $0x158] sm:$0xff]
        %v1700 = vld [vmem:[#allocation14 + $0x160] sm:$0xff]
        %v1701 = vld [vmem:[#allocation14 + $0x168] sm:$0xff]
        %v1702 = vld [vmem:[#allocation14 + $0x170] sm:$0xff]
        %v1703 = vld [vmem:[#allocation14 + $0x178] sm:$0xff]
        %1704 = vmatprep.subr.mxu0 0.0
        %1705 = vmatpush1.msra.mxu0 %v1688
        %1706 = vmatprep.subr.mxu0 0.0
        %1707 = vmatpush1.msra.mxu0 %v1689
        %1708 = vmatprep.subr.mxu0 0.0
        %1709 = vmatpush1.msra.mxu0 %v1690
        %1710 = vmatprep.subr.mxu0 0.0
        %1711 = vmatpush1.msra.mxu0 %v1691
        %1712 = vmatprep.subr.mxu0 0.0
        %1713 = vmatpush1.msra.mxu0 %v1692
        %1714 = vmatprep.subr.mxu0 0.0
        %1715 = vmatpush1.msra.mxu0 %v1693
        %1716 = vmatprep.subr.mxu0 0.0
        %1717 = vmatpush1.msra.mxu0 %v1694
        %1718 = vmatprep.subr.mxu0 0.0
        %1719 = vmatpush1.msra.mxu0 %v1695
        %1720 = vmatprep.subr.mxu0 0.0
        %1721 = vmatpush1.msra.mxu0 %v1696
        %1722 = vmatprep.subr.mxu0 0.0
        %1723 = vmatpush1.msra.mxu0 %v1697
        %1724 = vmatprep.subr.mxu0 0.0
        %1725 = vmatpush1.msra.mxu0 %v1698
        %1726 = vmatprep.subr.mxu0 0.0
        %1727 = vmatpush1.msra.mxu0 %v1699
        %1728 = vmatprep.subr.mxu0 0.0
        %1729 = vmatpush1.msra.mxu0 %v1700
        %1730 = vmatprep.subr.mxu0 0.0
        %1731 = vmatpush1.msra.mxu0 %v1701
        %1732 = vmatprep.subr.mxu0 0.0
        %1733 = vmatpush1.msra.mxu0 %v1702
        %1734 = vmatprep.subr.mxu0 0.0
        %1735 = vmatpush1.msra.mxu0 %v1703
        %1736 = vmatprep.subr.mxu0 0.0
        %1737 = vmatpush1.msra.mxu0 0.0
        %1738 = vmatprep.subr.mxu0 0.0
        %1739 = vmatpush1.msra.mxu0 0.0
        %1740 = vmatprep.subr.mxu0 0.0
        %1741 = vmatpush1.msra.mxu0 0.0
        %1742 = vmatprep.subr.mxu0 0.0
        %1743 = vmatpush1.msra.mxu0 0.0
        %1744 = vmatprep.subr.mxu0 0.0
        %1745 = vmatpush1.msra.mxu0 0.0
        %1746 = vmatprep.subr.mxu0 0.0
        %1747 = vmatpush1.msra.mxu0 0.0
        %1748 = vmatprep.subr.mxu0 0.0
        %1749 = vmatpush1.msra.mxu0 0.0
        %1750 = vmatprep.subr.mxu0 0.0
        %1751 = vmatpush1.msra.mxu0 0.0
        %1752 = vmatprep.subr.mxu0 0.0
        %1753 = vmatpush1.msra.mxu0 0.0
        %1754 = vmatprep.subr.mxu0 0.0
        %1755 = vmatpush1.msra.mxu0 0.0
        %1756 = vmatprep.subr.mxu0 0.0
        %1757 = vmatpush1.msra.mxu0 0.0
        %1758 = vmatprep.subr.mxu0 0.0
        %1759 = vmatpush1.msra.mxu0 0.0
        %1760 = vmatprep.subr.mxu0 0.0
        %1761 = vmatpush1.msra.mxu0 0.0
        %1762 = vmatprep.subr.mxu0 0.0
        %1763 = vmatpush1.msra.mxu0 0.0
        %1764 = vmatprep.subr.mxu0 0.0
        %1765 = vmatpush1.msra.mxu0 0.0
        %1766 = vmatprep.subr.mxu0 0.0
        %1767 = vmatpush1.msra.mxu0 0.0
        %1768 = vmatprep.mubr.f32.mxu0 0.0
        %1769 = vmatmul.mubr.f32.gmra.mrb[0].mxu0 %v1687
        %v1770 = vpop.f32.mrb[0].mxu0
        %v1771 = vadd.f32 0.0, %v1770
        %v1772 = vpop.f32.mrb[0].mxu0
        %1773 = vdwg.mxu0
        %v1774 = vadd.f32 %v1524, %v1771
        %v1775 = vld [vmem:[#allocation2 + $0x18] sm:$0xff]
        %v1776 = vld [vmem:[#allocation2 + $0x38] sm:$0xff]
        %1777 = vmatprep.subr.mxu0 0.0
        %1778 = vmatpush1.xpose.msra.mxu0 %v1775
        %1779 = vmatprep.subr.mxu0 0.0
        %1780 = vmatpush1.xpose.msra.mxu0 0.0
        %1781 = vmatprep.subr.mxu0 0.0
        %1782 = vmatpush1.xpose.msra.mxu0 0.0
        %1783 = vmatprep.subr.mxu0 0.0
        %1784 = vmatpush1.xpose.msra.mxu0 0.0
        %1785 = vmatprep.subr.mxu0 0.0
        %1786 = vmatpush1.xpose.msra.mxu0 0.0
        %1787 = vmatprep.subr.mxu0 0.0
        %1788 = vmatpush1.xpose.msra.mxu0 0.0
        %1789 = vmatprep.subr.mxu0 0.0
        %1790 = vmatpush1.xpose.msra.mxu0 0.0
        %1791 = vmatprep.subr.mxu0 0.0
        %1792 = vmatpush1.xpose.msra.mxu0 0.0
        %1793 = vmatprep.subr.mxu0 0.0
        %1794 = vmatpush1.xpose.msra.mxu0 0.0
        %1795 = vmatprep.subr.mxu0 0.0
        %1796 = vmatpush1.xpose.msra.mxu0 0.0
        %1797 = vmatprep.subr.mxu0 0.0
        %1798 = vmatpush1.xpose.msra.mxu0 0.0
        %1799 = vmatprep.subr.mxu0 0.0
        %1800 = vmatpush1.xpose.msra.mxu0 0.0
        %1801 = vmatprep.subr.mxu0 0.0
        %1802 = vmatpush1.xpose.msra.mxu0 0.0
        %1803 = vmatprep.subr.mxu0 0.0
        %1804 = vmatpush1.xpose.msra.mxu0 0.0
        %1805 = vmatprep.subr.mxu0 0.0
        %1806 = vmatpush1.xpose.msra.mxu0 0.0
        %1807 = vmatprep.subr.mxu0 0.0
        %1808 = vmatpush1.xpose.msra.mxu0 0.0
        %1809 = vmatprep.subr.mxu0 0.0
        %1810 = vmatpush1.xpose.msra.mxu0 0.0
        %1811 = vmatprep.subr.mxu0 0.0
        %1812 = vmatpush1.xpose.msra.mxu0 0.0
        %1813 = vmatprep.subr.mxu0 0.0
        %1814 = vmatpush1.xpose.msra.mxu0 0.0
        %1815 = vmatprep.subr.mxu0 0.0
        %1816 = vmatpush1.xpose.msra.mxu0 0.0
        %1817 = vmatprep.subr.mxu0 0.0
        %1818 = vmatpush1.xpose.msra.mxu0 0.0
        %1819 = vmatprep.subr.mxu0 0.0
        %1820 = vmatpush1.xpose.msra.mxu0 0.0
        %1821 = vmatprep.subr.mxu0 0.0
        %1822 = vmatpush1.xpose.msra.mxu0 0.0
        %1823 = vmatprep.subr.mxu0 0.0
        %1824 = vmatpush1.xpose.msra.mxu0 0.0
        %1825 = vmatprep.subr.mxu0 0.0
        %1826 = vmatpush1.xpose.msra.mxu0 0.0
        %1827 = vmatprep.subr.mxu0 0.0
        %1828 = vmatpush1.xpose.msra.mxu0 0.0
        %1829 = vmatprep.subr.mxu0 0.0
        %1830 = vmatpush1.xpose.msra.mxu0 0.0
        %1831 = vmatprep.subr.mxu0 0.0
        %1832 = vmatpush1.xpose.msra.mxu0 0.0
        %1833 = vmatprep.subr.mxu0 0.0
        %1834 = vmatpush1.xpose.msra.mxu0 0.0
        %1835 = vmatprep.subr.mxu0 0.0
        %1836 = vmatpush1.xpose.msra.mxu0 0.0
        %1837 = vmatprep.subr.mxu0 0.0
        %1838 = vmatpush1.xpose.msra.mxu0 0.0
        %1839 = vmatprep.subr.mxu0 0.0
        %1840 = vmatpush1.xpose.msra.mxu0 0.0
        %1841 = vmatprep.mubr.f32.mxu0 0.0
        %1842 = vmatmul.mubr.f32.gmra.mrb[0].mxu0 %v1014
        %v1843 = vpop.f32.mrb[0].mxu0
        %v1844 = vadd.f32 0.0, %v1843
        %v1845 = vpop.f32.mrb[0].mxu0
        %1846 = vdwg.mxu0
        %v1847 = vsel %vm1096, %v1844, -inf
        %1848 = vmax.xlane.f32.xlu0 %v1847
        %v1849 = vpop.xlane.xlu0 %1848
        %v1850 = vsub.f32 -inf, %v1849
        %v1851 = vmul.f32 %v1850, 1.442695
        %v1852 = vpow.pop %v1851
        %v1853 = vsub.f32 %v1844, %v1849
        %v1854 = vmul.f32 %v1853, 1.442695
        %v1855 = vpow.pop %v1854
        %v1856 = vmul.f32 %v1852, 0.0
        %v1857 = vsel %vm1096, %v1855, 0.0
        %1858 = vadd.xlane.f32.xlu0 %v1857
        %v1859 = vpop.xlane.xlu0 %1858
        %v1860 = vadd.f32 %v1856, %v1859
        %v1862 = vsel %vm1096, %v1855, 0
        %1864 = vmatprep.subr.mxu0 0.0
        %1865 = vmatpush1.msra.mxu0 %v1776
        %1866 = vmatprep.subr.mxu0 0.0
        %1867 = vmatpush1.msra.mxu0 0.0
        %1868 = vmatprep.subr.mxu0 0.0
        %1869 = vmatpush1.msra.mxu0 0.0
        %1870 = vmatprep.subr.mxu0 0.0
        %1871 = vmatpush1.msra.mxu0 0.0
        %1872 = vmatprep.subr.mxu0 0.0
        %1873 = vmatpush1.msra.mxu0 0.0
        %1874 = vmatprep.subr.mxu0 0.0
        %1875 = vmatpush1.msra.mxu0 0.0
        %1876 = vmatprep.subr.mxu0 0.0
        %1877 = vmatpush1.msra.mxu0 0.0
        %1878 = vmatprep.subr.mxu0 0.0
        %1879 = vmatpush1.msra.mxu0 0.0
        %1880 = vmatprep.subr.mxu0 0.0
        %1881 = vmatpush1.msra.mxu0 0.0
        %1882 = vmatprep.subr.mxu0 0.0
        %1883 = vmatpush1.msra.mxu0 0.0
        %1884 = vmatprep.subr.mxu0 0.0
        %1885 = vmatpush1.msra.mxu0 0.0
        %1886 = vmatprep.subr.mxu0 0.0
        %1887 = vmatpush1.msra.mxu0 0.0
        %1888 = vmatprep.subr.mxu0 0.0
        %1889 = vmatpush1.msra.mxu0 0.0
        %1890 = vmatprep.subr.mxu0 0.0
        %1891 = vmatpush1.msra.mxu0 0.0
        %1892 = vmatprep.subr.mxu0 0.0
        %1893 = vmatpush1.msra.mxu0 0.0
        %1894 = vmatprep.subr.mxu0 0.0
        %1895 = vmatpush1.msra.mxu0 0.0
        %1896 = vmatprep.subr.mxu0 0.0
        %1897 = vmatpush1.msra.mxu0 0.0
        %1898 = vmatprep.subr.mxu0 0.0
        %1899 = vmatpush1.msra.mxu0 0.0
        %1900 = vmatprep.subr.mxu0 0.0
        %1901 = vmatpush1.msra.mxu0 0.0
        %1902 = vmatprep.subr.mxu0 0.0
        %1903 = vmatpush1.msra.mxu0 0.0
        %1904 = vmatprep.subr.mxu0 0.0
        %1905 = vmatpush1.msra.mxu0 0.0
        %1906 = vmatprep.subr.mxu0 0.0
        %1907 = vmatpush1.msra.mxu0 0.0
        %1908 = vmatprep.subr.mxu0 0.0
        %1909 = vmatpush1.msra.mxu0 0.0
        %1910 = vmatprep.subr.mxu0 0.0
        %1911 = vmatpush1.msra.mxu0 0.0
        %1912 = vmatprep.subr.mxu0 0.0
        %1913 = vmatpush1.msra.mxu0 0.0
        %1914 = vmatprep.subr.mxu0 0.0
        %1915 = vmatpush1.msra.mxu0 0.0
        %1916 = vmatprep.subr.mxu0 0.0
        %1917 = vmatpush1.msra.mxu0 0.0
        %1918 = vmatprep.subr.mxu0 0.0
        %1919 = vmatpush1.msra.mxu0 0.0
        %1920 = vmatprep.subr.mxu0 0.0
        %1921 = vmatpush1.msra.mxu0 0.0
        %1922 = vmatprep.subr.mxu0 0.0
        %1923 = vmatpush1.msra.mxu0 0.0
        %1924 = vmatprep.subr.mxu0 0.0
        %1925 = vmatpush1.msra.mxu0 0.0
        %1926 = vmatprep.subr.mxu0 0.0
        %1927 = vmatpush1.msra.mxu0 0.0
        %1928 = vmatprep.mubr.f32.mxu0 0.0
        %1929 = vmatmul.mubr.f32.gmra.mrb[0].mxu0 %v1862
        %v1930 = vpop.f32.mrb[0].mxu0
        %v1931 = vadd.f32 0.0, %v1930
        %v1932 = vpop.f32.mrb[0].mxu0
        %1933 = vdwg.mxu0
        %v1934 = vadd.f32 %v1856, %v1931
        %v1935 = vrcp.pop %v1860
        %v1936 = vmul.f32 1.0, %v1935
        %v1937 = vmul.f32 %v1934, %v1936
        %v1938 = vld [vmem:[#allocation14 + $0x180] sm:$0xff]
        %v1939 = vld [vmem:[#allocation14 + $0x188] sm:$0xff]
        %v1940 = vld [vmem:[#allocation14 + $0x190] sm:$0xff]
        %v1941 = vld [vmem:[#allocation14 + $0x198] sm:$0xff]
        %v1942 = vld [vmem:[#allocation14 + $0x1a0] sm:$0xff]
        %v1943 = vld [vmem:[#allocation14 + $0x1a8] sm:$0xff]
        %v1944 = vld [vmem:[#allocation14 + $0x1b0] sm:$0xff]
        %v1945 = vld [vmem:[#allocation14 + $0x1b8] sm:$0xff]
        %v1946 = vld [vmem:[#allocation14 + $0x1c0] sm:$0xff]
        %v1947 = vld [vmem:[#allocation14 + $0x1c8] sm:$0xff]
        %v1948 = vld [vmem:[#allocation14 + $0x1d0] sm:$0xff]
        %v1949 = vld [vmem:[#allocation14 + $0x1d8] sm:$0xff]
        %v1950 = vld [vmem:[#allocation14 + $0x1e0] sm:$0xff]
        %v1951 = vld [vmem:[#allocation14 + $0x1e8] sm:$0xff]
        %v1952 = vld [vmem:[#allocation14 + $0x1f0] sm:$0xff]
        %v1953 = vld [vmem:[#allocation14 + $0x1f8] sm:$0xff]
        %1954 = vmatprep.subr.mxu0 0.0
        %1955 = vmatpush1.msra.mxu0 %v1938
        %1956 = vmatprep.subr.mxu0 0.0
        %1957 = vmatpush1.msra.mxu0 %v1939
        %1958 = vmatprep.subr.mxu0 0.0
        %1959 = vmatpush1.msra.mxu0 %v1940
        %1960 = vmatprep.subr.mxu0 0.0
        %1961 = vmatpush1.msra.mxu0 %v1941
        %1962 = vmatprep.subr.mxu0 0.0
        %1963 = vmatpush1.msra.mxu0 %v1942
        %1964 = vmatprep.subr.mxu0 0.0
        %1965 = vmatpush1.msra.mxu0 %v1943
        %1966 = vmatprep.subr.mxu0 0.0
        %1967 = vmatpush1.msra.mxu0 %v1944
        %1968 = vmatprep.subr.mxu0 0.0
        %1969 = vmatpush1.msra.mxu0 %v1945
        %1970 = vmatprep.subr.mxu0 0.0
        %1971 = vmatpush1.msra.mxu0 %v1946
        %1972 = vmatprep.subr.mxu0 0.0
        %1973 = vmatpush1.msra.mxu0 %v1947
        %1974 = vmatprep.subr.mxu0 0.0
        %1975 = vmatpush1.msra.mxu0 %v1948
        %1976 = vmatprep.subr.mxu0 0.0
        %1977 = vmatpush1.msra.mxu0 %v1949
        %1978 = vmatprep.subr.mxu0 0.0
        %1979 = vmatpush1.msra.mxu0 %v1950
        %1980 = vmatprep.subr.mxu0 0.0
        %1981 = vmatpush1.msra.mxu0 %v1951
        %1982 = vmatprep.subr.mxu0 0.0
        %1983 = vmatpush1.msra.mxu0 %v1952
        %1984 = vmatprep.subr.mxu0 0.0
        %1985 = vmatpush1.msra.mxu0 %v1953
        %1986 = vmatprep.subr.mxu0 0.0
        %1987 = vmatpush1.msra.mxu0 0.0
        %1988 = vmatprep.subr.mxu0 0.0
        %1989 = vmatpush1.msra.mxu0 0.0
        %1990 = vmatprep.subr.mxu0 0.0
        %1991 = vmatpush1.msra.mxu0 0.0
        %1992 = vmatprep.subr.mxu0 0.0
        %1993 = vmatpush1.msra.mxu0 0.0
        %1994 = vmatprep.subr.mxu0 0.0
        %1995 = vmatpush1.msra.mxu0 0.0
        %1996 = vmatprep.subr.mxu0 0.0
        %1997 = vmatpush1.msra.mxu0 0.0
        %1998 = vmatprep.subr.mxu0 0.0
        %1999 = vmatpush1.msra.mxu0 0.0
        %2000 = vmatprep.subr.mxu0 0.0
        %2001 = vmatpush1.msra.mxu0 0.0
        %2002 = vmatprep.subr.mxu0 0.0
        %2003 = vmatpush1.msra.mxu0 0.0
        %2004 = vmatprep.subr.mxu0 0.0
        %2005 = vmatpush1.msra.mxu0 0.0
        %2006 = vmatprep.subr.mxu0 0.0
        %2007 = vmatpush1.msra.mxu0 0.0
        %2008 = vmatprep.subr.mxu0 0.0
        %2009 = vmatpush1.msra.mxu0 0.0
        %2010 = vmatprep.subr.mxu0 0.0
        %2011 = vmatpush1.msra.mxu0 0.0
        %2012 = vmatprep.subr.mxu0 0.0
        %2013 = vmatpush1.msra.mxu0 0.0
        %2014 = vmatprep.subr.mxu0 0.0
        %2015 = vmatpush1.msra.mxu0 0.0
        %2016 = vmatprep.subr.mxu0 0.0
        %2017 = vmatpush1.msra.mxu0 0.0
        %2018 = vmatprep.mubr.f32.mxu0 0.0
        %2019 = vmatmul.mubr.f32.gmra.mrb[0].mxu0 %v1937
        %v2020 = vpop.f32.mrb[0].mxu0
        %v2021 = vadd.f32 0.0, %v2020
        %v2022 = vpop.f32.mrb[0].mxu0
        %2023 = vdwg.mxu0
        %v2024 = vadd.f32 %v1774, %v2021
        %2025 = vst.msk [vmem:[%s455] sm:$0xff] %vm870, %v2024
        %s2026 = sand.u32 %s233, 1
        %s2027 = scalar_lea.sflag [#allocation5], %s2026
        %s2028 = sand.u32 %s233, 1
        %s2029 = smul.addr %s2028, 8
        %s2030 = scalar_lea.vmem [#allocation17], %s2029
        // Predicated region
        $region89: #{tpu_custom_call.1} parent=51 // pred_check
          %p2031 = pneg %p243
        $region90: #{tpu_custom_call.1} parent=51 // pred_check_branch
          %2033 = sbr.rel (%p2031) target = $region92
        $region91: #{tpu_custom_call.1} parent=51 // pred_region
          %s2035 = ssub.s32 128, 128
          %2036 = vsyncadd %s2027, %s2035
          %s2037 = sadd.s32 %s36, %s35
          %s2038 = smul.addr %s2037, 128
          %s2039 = scalar_lea.hbm %s8, %s2038
          %s2041 = sshll.u32 %s2030, 4
          %s2042 = int_to_ptr.vmem [resolvable:$true] %s2041
          %2044 = dma.vmem_to_hbm [thread:$0]  %s2042, 128, %s2039, %s2027
        $region92: #{tpu_custom_call.1} parent=51 // pred_fallthru
          _
      $region52: #{tpu_custom_call.1} parent=5 // pred_fallthru
        _
      %p2045 = scmp.le.s32.totalorder 2, %s26
      // Predicated region
      $region93: #{tpu_custom_call.1} parent=5 // pred_check
        %p2046 = pneg %p2045
      $region94: #{tpu_custom_call.1} parent=5 // pred_check_branch
        %2048 = sbr.rel (%p2046) target = $region96
      $region95: #{tpu_custom_call.1} parent=5 // pred_region
        %s2049 = ssub.s32 %s26, 2
        // Predicated region
        $region97: #{tpu_custom_call.1} parent=95 // pred_check
          %p2050 = pneg %p249
        $region98: #{tpu_custom_call.1} parent=95 // pred_check_branch
          %2052 = sbr.rel (%p2050) target = $region100
        $region99: #{tpu_custom_call.1} parent=95 // pred_region
          %s2053 = sand.u32 %s234, 1
          %s2054 = scalar_lea.sflag [#allocation5], %s2053
          %s2055 = sand.u32 %s234, 1
          %s2056 = smul.addr %s2055, 8
          %s2057 = scalar_lea.vmem [#allocation17], %s2056
          %2058 = dma.done %s2054, 128
        $region100: #{tpu_custom_call.1} parent=95 // pred_fallthru
          _
      $region96: #{tpu_custom_call.1} parent=5 // pred_fallthru
        _
    $region6: #{tpu_custom_call.1} parent=1 // loop_footer
      %s30 = sadd.s32 1, %s26
    $region7: #{tpu_custom_call.1} parent=1 // loop_footer_branch
      %25 = sbr.rel target = $region3
    $region8: #{tpu_custom_call.1} parent=1 // loop_exit
      _
    %2059 = vsyncpa [#allocation4], 1
    %s2060 = scalar_lea.sflag [#allocation4], 1
    %2061 = vsyncpa %s2060, 1
    %2062 = vsyncpa [#allocation7], 1
    %s2063 = scalar_lea.sflag [#allocation7], 1
    %2064 = vsyncpa %s2063, 1
    %2065 = vsyncpa [#allocation10], 1
    %2066 = vsyncpa [#allocation13], 1
    %2067 = vsyncpa [#allocation16], 1
    %2068 = vsyncpa [#allocation5], 1
    %s2069 = scalar_lea.sflag [#allocation5], 1
    %2070 = vsyncpa %s2069, 1

</llo_original>
